<compile_context>
chip_gen: v5e
topology: v5e:2x2
jax: 0.10.0
libtpu: 0.0.40
codegen_flags: <defaults>
</compile_context>

<pallas_src>
import functools

import jax
import jax.numpy as jnp
import numpy as np
from jax import lax
from jax.experimental import pallas as pl
from jax.experimental.pallas import tpu as pltpu


def _round_up(x, m):
    return ((x + m - 1) // m) * m


# ----------------------------------------------------------------------------
# Pallas kernels
# ----------------------------------------------------------------------------
def matmul_bias_kernel(x_ref, w_ref, b_ref, o_ref):
    """One row-tile of (M, K) @ (K, N) + (1, N) -> (M, N), bf16 MXU, f32 accum."""
    acc = jnp.dot(
        x_ref[...].astype(jnp.bfloat16),
        w_ref[...],
        preferred_element_type=jnp.float32,
    )
    o_ref[...] = (acc + b_ref[...]).astype(o_ref.dtype)


def lstm_recurrence_kernel(xp_ref, whh_ref, y_ref, h_scr, c_scr):
    """One time-block of the LSTM recurrence.

    xp_ref : (Tt, Bp, 4*Hp)  precomputed x @ W_ih + b (f32), gate blocks lane-aligned
    whh_ref: (Hp, 4*Hp)      hidden->gates weights (bf16, resident across grid)
    y_ref  : (Tt, Bp, Hp)    per-step hidden outputs (f32)
    h_scr  : (Bp, Hp)        running hidden state (f32 scratch, persists over grid)
    c_scr  : (Bp, Hp)        running cell state   (f32 scratch, persists over grid)
    """
    @pl.when(pl.program_id(0) == 0)
    def _init():
        h_scr[...] = jnp.zeros_like(h_scr)
        c_scr[...] = jnp.zeros_like(c_scr)

    Hp = h_scr.shape[1]
    Tt = xp_ref.shape[0]
    w_hh = whh_ref[...]  # (Hp, 4*Hp) bf16

    def step(t, carry):
        h = h_scr[...]
        c = c_scr[...]
        gates = xp_ref[t] + jnp.dot(
            h.astype(jnp.bfloat16), w_hh, preferred_element_type=jnp.float32
        )  # (Bp, 4*Hp) f32
        i = jax.nn.sigmoid(gates[:, 0 * Hp:1 * Hp])
        f = jax.nn.sigmoid(gates[:, 1 * Hp:2 * Hp])
        g = jnp.tanh(gates[:, 2 * Hp:3 * Hp])
        o = jax.nn.sigmoid(gates[:, 3 * Hp:4 * Hp])
        c_new = f * c + i * g
        h_new = o * jnp.tanh(c_new)
        c_scr[...] = c_new
        h_scr[...] = h_new
        y_ref[t] = h_new.astype(y_ref.dtype)
        return carry

    # Fully unrolled so the MXU push of step t+1 overlaps the gate math of step t.
    lax.fori_loop(0, Tt, step, 0, unroll=True)


# ----------------------------------------------------------------------------
# Pallas wrappers
# ----------------------------------------------------------------------------
def matmul_bias(x, w, b):
    """x (M, K) f32  @  w (K, N) bf16  +  b (1, N) f32  ->  (M, N) f32.

    Rows tiled over a "parallel" grid; K and N (multiples of 128) kept whole.
    """
    M, K = x.shape
    N = w.shape[1]
    if M > 256:
        tile_m = 256
        Mp = _round_up(M, tile_m)
    else:
        Mp = _round_up(max(M, 1), 8)
        tile_m = Mp
    if Mp != M:
        x = jnp.pad(x, ((0, Mp - M), (0, 0)))

    out = pl.pallas_call(
        matmul_bias_kernel,
        out_shape=jax.ShapeDtypeStruct((Mp, N), jnp.float32),
        grid_spec=pltpu.PrefetchScalarGridSpec(
            num_scalar_prefetch=0,
            grid=(Mp // tile_m,),
            in_specs=[
                pl.BlockSpec((tile_m, K), lambda i: (i, 0)),
                pl.BlockSpec((K, N), lambda i: (0, 0)),
                pl.BlockSpec((1, N), lambda i: (0, 0)),
            ],
            out_specs=pl.BlockSpec((tile_m, N), lambda i: (i, 0)),
        ),
        compiler_params=pltpu.CompilerParams(
            dimension_semantics=("parallel",),
            vmem_limit_bytes=32 * 1024 * 1024,
        ),
    )(x, w, b)
    return out if Mp == M else out[:M]


def lstm_recurrence(x_proj, w_hh, *, time_block):
    """Run the recurrence over the whole (padded) sequence, streamed in time blocks."""
    Tp, Bp, G = x_proj.shape
    Hp = w_hh.shape[0]
    return pl.pallas_call(
        lstm_recurrence_kernel,
        out_shape=jax.ShapeDtypeStruct((Tp, Bp, Hp), jnp.float32),
        grid_spec=pltpu.PrefetchScalarGridSpec(
            num_scalar_prefetch=0,
            grid=(Tp // time_block,),
            in_specs=[
                pl.BlockSpec((time_block, Bp, G), lambda tb: (tb, 0, 0)),
                pl.BlockSpec((Hp, G), lambda tb: (0, 0)),  # resident weights
            ],
            out_specs=pl.BlockSpec((time_block, Bp, Hp), lambda tb: (tb, 0, 0)),
            scratch_shapes=[
                pltpu.VMEM((Bp, Hp), jnp.float32),  # h state
                pltpu.VMEM((Bp, Hp), jnp.float32),  # c state
            ],
        ),
        compiler_params=pltpu.CompilerParams(
            dimension_semantics=("arbitrary",),  # sequential recurrence over time
            vmem_limit_bytes=32 * 1024 * 1024,
        ),
    )(x_proj, w_hh)


# ----------------------------------------------------------------------------
# Model forward
# ----------------------------------------------------------------------------
@functools.partial(jax.jit, static_argnames=("output_size",))
def lstm_model_forward(x, p, *, output_size):
    """Equivalent of LSTM.forward(x): x (B, T, input_size) -> (B, T, output_size)."""
    B, T, _ = x.shape
    Hp = p["fc_w"].shape[0]
    Op = p["fc_w"].shape[1]
    G = 4 * Hp
    Bp = _round_up(max(B, 1), 8)      # sublane-aligned batch
    Tt = 8                            # time-block streamed per grid step
    Tp = _round_up(max(T, 1), Tt)

    # time-major + pad batch/time (padded rows/steps are discarded at the end)
    x_tm = jnp.transpose(x, (1, 0, 2)).astype(jnp.float32)   # (T, B, D_in)
    x_tm = jnp.pad(x_tm, ((0, Tp - T), (0, Bp - B), (0, 0)))

    acts = x_tm  # (Tp, Bp, D_in) for layer 0, (Tp, Bp, Hp) afterwards
    for (w_ih, w_hh, b) in p["lstm"]:
        K = acts.shape[2]
        # Hoisted input projection: one big matmul over all timesteps.
        xp = matmul_bias(acts.reshape(Tp * Bp, K), w_ih, b).reshape(Tp, Bp, G)
        # Serial recurrence, streamed over time blocks.
        acts = lstm_recurrence(xp, w_hh, time_block=Tt)       # (Tp, Bp, Hp)
        # TODO(synk): fusing all layers into one pallas_call would save the
        # per-layer activation round trip but conflicts with hoisting the
        # input projection of layer l (it needs layer l-1's full output).

    # FC head: lane-dense padded output (Op multiple of 128), tiled over rows.
    y = matmul_bias(acts.reshape(Tp * Bp, Hp), p["fc_w"], p["fc_b"])
    y = y.reshape(Tp, Bp, Op)
    y = jnp.transpose(y, (1, 0, 2))                           # (Bp, Tp, Op)
    return y[:B, :T, :output_size]


# ----------------------------------------------------------------------------
# Parameter prep (once, at load time): transpose, pad gates to 128 lanes, cast.
# ----------------------------------------------------------------------------
def prepare_params(raw, hidden_size, output_size):
    H = hidden_size
    Hp = _round_up(H, 128)
    G = 4 * Hp
    O = output_size
    Op = _round_up(O, 128)

    def pack_gate_cols(w_t):  # (K, 4H) -> (K, 4*Hp), gate k at columns [k*Hp, k*Hp+H)
        K = w_t.shape[0]
        out = np.zeros((K, G), np.float32)
        for k in range(4):
            out[:, k * Hp:k * Hp + H] = w_t[:, k * H:(k + 1) * H]
        return out

    layers = []
    for idx, (w_ih, w_hh, b_ih, b_hh) in enumerate(raw["lstm"]):
        d_in = w_ih.shape[1]
        k_in = d_in if idx == 0 else Hp  # layers > 0 consume Hp-wide padded activations
        w_ih_p = np.zeros((k_in, G), np.float32)
        w_ih_p[:d_in] = pack_gate_cols(np.asarray(w_ih).T)   # (d_in, 4H) packed
        w_hh_p = np.zeros((Hp, G), np.float32)
        w_hh_p[:H] = pack_gate_cols(np.asarray(w_hh).T)      # (H, 4H) packed
        b = np.asarray(b_ih) + np.asarray(b_hh)
        b_p = np.zeros((1, G), np.float32)
        for k in range(4):
            b_p[0, k * Hp:k * Hp + H] = b[k * H:(k + 1) * H]
        layers.append((
            jnp.asarray(w_ih_p, jnp.bfloat16),
            jnp.asarray(w_hh_p, jnp.bfloat16),
            jnp.asarray(b_p, jnp.float32),
        ))

    fc_w_p = np.zeros((Hp, Op), np.float32)
    fc_w_p[:H, :O] = np.asarray(raw["fc_w"]).T               # (H, O)
    fc_b_p = np.zeros((1, Op), np.float32)
    fc_b_p[0, :O] = np.asarray(raw["fc_b"])
    return {
        "lstm": layers,
        "fc_w": jnp.asarray(fc_w_p, jnp.bfloat16),
        "fc_b": jnp.asarray(fc_b_p, jnp.float32),
    }


# ----------------------------------------------------------------------------
# Pure-JAX f32 reference (silent correctness check)
# ----------------------------------------------------------------------------
def reference_forward(x, params):
    B, T, _ = x.shape
    h_seq = x
    for (w_ih, w_hh, b_ih, b_hh) in params["lstm"]:
        H = w_hh.shape[1]
        h = jnp.zeros((B, H), jnp.float32)
        c = jnp.zeros((B, H), jnp.float32)

        def step(carry, x_t):
            h, c = carry
            gates = x_t @ w_ih.T + b_ih + h @ w_hh.T + b_hh
            i = jax.nn.sigmoid(gates[:, 0:H])
            f = jax.nn.sigmoid(gates[:, H:2 * H])
            g = jnp.tanh(gates[:, 2 * H:3 * H])
            o = jax.nn.sigmoid(gates[:, 3 * H:4 * H])
            c = f * c + i * g
            h = o * jnp.tanh(c)
            return (h, c), h

        _, ys = lax.scan(step, (h, c), jnp.transpose(h_seq, (1, 0, 2)))
        h_seq = jnp.transpose(ys, (1, 0, 2))
    return h_seq @ params["fc_w"].T + params["fc_b"]


# ----------------------------------------------------------------------------
# Deterministic parameter init (same shapes as nn.LSTM / nn.Linear)
# ----------------------------------------------------------------------------
def init_params(key, input_size, hidden_size, num_layers, output_size):
    params = {"lstm": []}
    bound = 1.0 / np.sqrt(hidden_size)
    for layer in range(num_layers):
        d_in = input_size if layer == 0 else hidden_size
        key, k1, k2, k3, k4 = jax.random.split(key, 5)
        w_ih = jax.random.uniform(k1, (4 * hidden_size, d_in), jnp.float32, -bound, bound)
        w_hh = jax.random.uniform(k2, (4 * hidden_size, hidden_size), jnp.float32, -bound, bound)
        b_ih = jax.random.uniform(k3, (4 * hidden_size,), jnp.float32, -bound, bound)
        b_hh = jax.random.uniform(k4, (4 * hidden_size,), jnp.float32, -bound, bound)
        params["lstm"].append((w_ih, w_hh, b_ih, b_hh))
    key, k5, k6 = jax.random.split(key, 3)
    fb = 1.0 / np.sqrt(hidden_size)
    params["fc_w"] = jax.random.uniform(k5, (output_size, hidden_size), jnp.float32, -fb, fb)
    params["fc_b"] = jax.random.uniform(k6, (output_size,), jnp.float32, -fb, fb)
    return params


if __name__ == "__main__":
    batch, seq = 2, 8
    input_size, hidden_size, num_layers, output_size = 16, 32, 2, 8

    key = jax.random.PRNGKey(0)
    key, kx = jax.random.split(key)
    x = jax.random.normal(kx, (batch, seq, input_size), jnp.float32)
    raw_params = init_params(key, input_size, hidden_size, num_layers, output_size)
    prepared = prepare_params(raw_params, hidden_size, output_size)

    out = lstm_model_forward(x, prepared, output_size=output_size)
    out = jax.block_until_ready(out)

    ref = jax.block_until_ready(reference_forward(x, raw_params))
    assert out.shape == (batch, seq, output_size)
    # bf16 matmul operands (f32 accumulation) -> loosen tolerance vs f32 reference.
    assert np.allclose(np.asarray(out), np.asarray(ref), atol=2e-2, rtol=2e-2)

    print("KERNEL_OK")
</pallas_src>

<mosaic_0001>
module attributes {stable_mosaic.version = 11 : i64} {
  func.func @matmul_bias_kernel(%arg0: i32, %arg1: memref<64x16xf32, #tpu.memory_space<vmem>>, %arg2: memref<16x512xbf16, #tpu.memory_space<vmem>>, %arg3: memref<1x512xf32, #tpu.memory_space<vmem>>, %arg4: memref<64x512xf32, #tpu.memory_space<vmem>>) attributes {dimension_semantics = [#tpu.dimension_semantics<parallel>], iteration_bounds = array<i64: 1>, scalar_prefetch = 0 : i64, scratch_operands = 0 : i64, tpu.core_type = #tpu.core_type<tc>, window_params = [{transform_indices = @transform_0, window_bounds = array<i64: 64, 16>}, {pipeline_mode = #tpu.pipeline_mode<synchronous>, transform_indices = @transform_1, window_bounds = array<i64: 16, 512>}, {pipeline_mode = #tpu.pipeline_mode<synchronous>, transform_indices = @transform_2, window_bounds = array<i64: 1, 512>}, {transform_indices = @transform_3, window_bounds = array<i64: 64, 512>}]} {
    %c0 = arith.constant 0 : index
    %c0_0 = arith.constant 0 : index
    %0 = vector.load %arg1[%c0, %c0_0] : memref<64x16xf32, #tpu.memory_space<vmem>>, vector<64x16xf32>
    %1 = arith.truncf %0 : vector<64x16xf32> to vector<64x16xbf16>
    %c0_1 = arith.constant 0 : index
    %c0_2 = arith.constant 0 : index
    %2 = vector.load %arg2[%c0_1, %c0_2] : memref<16x512xbf16, #tpu.memory_space<vmem>>, vector<16x512xbf16>
    %cst = arith.constant dense<0.000000e+00> : vector<64x512xf32>
    %3 = tpu.matmul %1, %2, %cst {dimension_numbers = #tpu.dot_dimension_numbers<[1], [0], [0], [1], [0, 0, 1, 1], [], []>} : vector<64x16xbf16>, vector<16x512xbf16>, vector<64x512xf32> -> vector<64x512xf32>
    %c0_3 = arith.constant 0 : index
    %c0_4 = arith.constant 0 : index
    %4 = vector.load %arg3[%c0_3, %c0_4] : memref<1x512xf32, #tpu.memory_space<vmem>>, vector<1x512xf32>
    %5 = vector.broadcast %4 : vector<1x512xf32> to vector<64x512xf32>
    %6 = arith.addf %3, %5 : vector<64x512xf32>
    %c0_5 = arith.constant 0 : index
    %c0_6 = arith.constant 0 : index
    %7 = vector.load %arg4[%c0_5, %c0_6] : memref<64x512xf32, #tpu.memory_space<vmem>>, vector<64x512xf32>
    tpu.vector_store %arg4[%c0_5, %c0_6], %6 {strides = array<i32>} : memref<64x512xf32, #tpu.memory_space<vmem>>, vector<64x512xf32>,
    return
  }
  func.func @transform_0(%arg0: i32) -> (i32, i32) {
    %c0_i32 = arith.constant 0 : i32
    %c0_i32_0 = arith.constant 0 : i32
    return %arg0, %c0_i32 : i32, i32
  }
  func.func @transform_1(%arg0: i32) -> (i32, i32) {
    %c0_i32 = arith.constant 0 : i32
    %c0_i32_0 = arith.constant 0 : i32
    %c0_i32_1 = arith.constant 0 : i32
    return %c0_i32, %c0_i32_0 : i32, i32
  }
  func.func @transform_2(%arg0: i32) -> (i32, i32) {
    %c0_i32 = arith.constant 0 : i32
    %c0_i32_0 = arith.constant 0 : i32
    %c0_i32_1 = arith.constant 0 : i32
    return %c0_i32, %c0_i32_0 : i32, i32
  }
  func.func @transform_3(%arg0: i32) -> (i32, i32) {
    %c0_i32 = arith.constant 0 : i32
    %c0_i32_0 = arith.constant 0 : i32
    return %arg0, %c0_i32 : i32, i32
  }
}

module attributes {stable_mosaic.version = 11 : i64} {
  func.func @lstm_recurrence_kernel(%arg0: i32, %arg1: memref<8x8x512xf32, #tpu.memory_space<vmem>>, %arg2: memref<128x512xbf16, #tpu.memory_space<vmem>>, %arg3: memref<8x8x128xf32, #tpu.memory_space<vmem>>, %arg4: memref<8x128xf32, #tpu.memory_space<vmem>>, %arg5: memref<8x128xf32, #tpu.memory_space<vmem>>) attributes {dimension_semantics = [#tpu.dimension_semantics<arbitrary>], iteration_bounds = array<i64: 1>, scalar_prefetch = 0 : i64, scratch_operands = 2 : i64, tpu.core_type = #tpu.core_type<tc>, window_params = [{transform_indices = @transform_0, window_bounds = array<i64: 8, 8, 512>}, {pipeline_mode = #tpu.pipeline_mode<synchronous>, transform_indices = @transform_1, window_bounds = array<i64: 128, 512>}, {transform_indices = @transform_2, window_bounds = array<i64: 8, 8, 128>}]} {
    %c0_i32 = arith.constant 0 : i32
    %0 = arith.cmpi eq, %arg0, %c0_i32 : i32
    %1 = arith.extui %0 : i1 to i32
    %c0_i32_0 = arith.constant 0 : i32
    %2 = arith.cmpi ne, %1, %c0_i32_0 : i32
    scf.if %2 {
      %cst_130 = arith.constant 0.000000e+00 : f32
      %316 = vector.broadcast %cst_130 : f32 to vector<8x128xf32>
      %c0_131 = arith.constant 0 : index
      %c0_132 = arith.constant 0 : index
      %317 = vector.load %arg4[%c0_131, %c0_132] : memref<8x128xf32, #tpu.memory_space<vmem>>, vector<8x128xf32>
      tpu.vector_store %arg4[%c0_131, %c0_132], %316 {strides = array<i32>} : memref<8x128xf32, #tpu.memory_space<vmem>>, vector<8x128xf32>,
      %cst_133 = arith.constant 0.000000e+00 : f32
      %318 = vector.broadcast %cst_133 : f32 to vector<8x128xf32>
      %c0_134 = arith.constant 0 : index
      %c0_135 = arith.constant 0 : index
      %319 = vector.load %arg5[%c0_134, %c0_135] : memref<8x128xf32, #tpu.memory_space<vmem>>, vector<8x128xf32>
      tpu.vector_store %arg5[%c0_134, %c0_135], %318 {strides = array<i32>} : memref<8x128xf32, #tpu.memory_space<vmem>>, vector<8x128xf32>,
    } else {
    }
    %c0 = arith.constant 0 : index
    %c0_1 = arith.constant 0 : index
    %3 = vector.load %arg2[%c0, %c0_1] : memref<128x512xbf16, #tpu.memory_space<vmem>>, vector<128x512xbf16>
    %c0_i32_2 = arith.constant 0 : i32
    %c0_3 = arith.constant 0 : index
    %c0_4 = arith.constant 0 : index
    %4 = vector.load %arg4[%c0_3, %c0_4] : memref<8x128xf32, #tpu.memory_space<vmem>>, vector<8x128xf32>
    %c0_5 = arith.constant 0 : index
    %c0_6 = arith.constant 0 : index
    %5 = vector.load %arg5[%c0_5, %c0_6] : memref<8x128xf32, #tpu.memory_space<vmem>>, vector<8x128xf32>
    %6 = arith.index_cast %c0_i32_2 : i32 to index
    %c0_7 = arith.constant 0 : index
    %c0_8 = arith.constant 0 : index
    %7 = vector.load %arg1[%6, %c0_7, %c0_8] : memref<8x8x512xf32, #tpu.memory_space<vmem>>, vector<1x8x512xf32>
    %8 = vector.shape_cast %7 : vector<1x8x512xf32> to vector<8x512xf32>
    %9 = arith.truncf %4 : vector<8x128xf32> to vector<8x128xbf16>
    %cst = arith.constant dense<0.000000e+00> : vector<8x512xf32>
    %10 = tpu.matmul %9, %3, %cst {dimension_numbers = #tpu.dot_dimension_numbers<[1], [0], [0], [1], [0, 0, 1, 1], [], []>} : vector<8x128xbf16>, vector<128x512xbf16>, vector<8x512xf32> -> vector<8x512xf32>
    %11 = arith.addf %8, %10 : vector<8x512xf32>
    %12 = vector.extract_strided_slice %11 {offsets = [0, 0], sizes = [8, 128], strides = [1, 1]} : vector<8x512xf32> to vector<8x128xf32>
    %13 = arith.negf %12 : vector<8x128xf32>
    %14 = math.exp %13 : vector<8x128xf32>
    %cst_9 = arith.constant 1.000000e+00 : f32
    %15 = vector.broadcast %cst_9 : f32 to vector<8x128xf32>
    %16 = arith.addf %15, %14 : vector<8x128xf32>
    %17 = arith.divf %15, %16 : vector<8x128xf32>
    %18 = vector.extract_strided_slice %11 {offsets = [0, 128], sizes = [8, 128], strides = [1, 1]} : vector<8x512xf32> to vector<8x128xf32>
    %19 = arith.negf %18 : vector<8x128xf32>
    %20 = math.exp %19 : vector<8x128xf32>
    %cst_10 = arith.constant 1.000000e+00 : f32
    %21 = vector.broadcast %cst_10 : f32 to vector<8x128xf32>
    %22 = arith.addf %21, %20 : vector<8x128xf32>
    %23 = arith.divf %21, %22 : vector<8x128xf32>
    %24 = vector.extract_strided_slice %11 {offsets = [0, 256], sizes = [8, 128], strides = [1, 1]} : vector<8x512xf32> to vector<8x128xf32>
    %25 = math.tanh %24 : vector<8x128xf32>
    %26 = vector.extract_strided_slice %11 {offsets = [0, 384], sizes = [8, 128], strides = [1, 1]} : vector<8x512xf32> to vector<8x128xf32>
    %27 = arith.negf %26 : vector<8x128xf32>
    %28 = math.exp %27 : vector<8x128xf32>
    %cst_11 = arith.constant 1.000000e+00 : f32
    %29 = vector.broadcast %cst_11 : f32 to vector<8x128xf32>
    %30 = arith.addf %29, %28 : vector<8x128xf32>
    %31 = arith.divf %29, %30 : vector<8x128xf32>
    %32 = arith.mulf %23, %5 : vector<8x128xf32>
    %33 = arith.mulf %17, %25 : vector<8x128xf32>
    %34 = arith.addf %32, %33 : vector<8x128xf32>
    %35 = math.tanh %34 : vector<8x128xf32>
    %36 = arith.mulf %31, %35 : vector<8x128xf32>
    %c0_12 = arith.constant 0 : index
    %c0_13 = arith.constant 0 : index
    %37 = vector.load %arg5[%c0_12, %c0_13] : memref<8x128xf32, #tpu.memory_space<vmem>>, vector<8x128xf32>
    tpu.vector_store %arg5[%c0_12, %c0_13], %34 {strides = array<i32>} : memref<8x128xf32, #tpu.memory_space<vmem>>, vector<8x128xf32>,
    %c0_14 = arith.constant 0 : index
    %c0_15 = arith.constant 0 : index
    %38 = vector.load %arg4[%c0_14, %c0_15] : memref<8x128xf32, #tpu.memory_space<vmem>>, vector<8x128xf32>
    tpu.vector_store %arg4[%c0_14, %c0_15], %36 {strides = array<i32>} : memref<8x128xf32, #tpu.memory_space<vmem>>, vector<8x128xf32>,
    %39 = arith.index_cast %c0_i32_2 : i32 to index
    %c0_16 = arith.constant 0 : index
    %c0_17 = arith.constant 0 : index
    %40 = vector.load %arg3[%39, %c0_16, %c0_17] : memref<8x8x128xf32, #tpu.memory_space<vmem>>, vector<1x8x128xf32>
    %41 = vector.shape_cast %40 : vector<1x8x128xf32> to vector<8x128xf32>
    %42 = vector.shape_cast %36 : vector<8x128xf32> to vector<1x8x128xf32>
    tpu.vector_store %arg3[%39, %c0_16, %c0_17], %42 {strides = array<i32>} : memref<8x8x128xf32, #tpu.memory_space<vmem>>, vector<1x8x128xf32>,
    %c1_i32 = arith.constant 1 : i32
    %c0_18 = arith.constant 0 : index
    %c0_19 = arith.constant 0 : index
    %43 = vector.load %arg4[%c0_18, %c0_19] : memref<8x128xf32, #tpu.memory_space<vmem>>, vector<8x128xf32>
    %c0_20 = arith.constant 0 : index
    %c0_21 = arith.constant 0 : index
    %44 = vector.load %arg5[%c0_20, %c0_21] : memref<8x128xf32, #tpu.memory_space<vmem>>, vector<8x128xf32>
    %45 = arith.index_cast %c1_i32 : i32 to index
    %c0_22 = arith.constant 0 : index
    %c0_23 = arith.constant 0 : index
    %46 = vector.load %arg1[%45, %c0_22, %c0_23] : memref<8x8x512xf32, #tpu.memory_space<vmem>>, vector<1x8x512xf32>
    %47 = vector.shape_cast %46 : vector<1x8x512xf32> to vector<8x512xf32>
    %48 = arith.truncf %43 : vector<8x128xf32> to vector<8x128xbf16>
    %cst_24 = arith.constant dense<0.000000e+00> : vector<8x512xf32>
    %49 = tpu.matmul %48, %3, %cst_24 {dimension_numbers = #tpu.dot_dimension_numbers<[1], [0], [0], [1], [0, 0, 1, 1], [], []>} : vector<8x128xbf16>, vector<128x512xbf16>, vector<8x512xf32> -> vector<8x512xf32>
    %50 = arith.addf %47, %49 : vector<8x512xf32>
    %51 = vector.extract_strided_slice %50 {offsets = [0, 0], sizes = [8, 128], strides = [1, 1]} : vector<8x512xf32> to vector<8x128xf32>
    %52 = arith.negf %51 : vector<8x128xf32>
    %53 = math.exp %52 : vector<8x128xf32>
    %cst_25 = arith.constant 1.000000e+00 : f32
    %54 = vector.broadcast %cst_25 : f32 to vector<8x128xf32>
    %55 = arith.addf %54, %53 : vector<8x128xf32>
    %56 = arith.divf %54, %55 : vector<8x128xf32>
    %57 = vector.extract_strided_slice %50 {offsets = [0, 128], sizes = [8, 128], strides = [1, 1]} : vector<8x512xf32> to vector<8x128xf32>
    %58 = arith.negf %57 : vector<8x128xf32>
    %59 = math.exp %58 : vector<8x128xf32>
    %cst_26 = arith.constant 1.000000e+00 : f32
    %60 = vector.broadcast %cst_26 : f32 to vector<8x128xf32>
    %61 = arith.addf %60, %59 : vector<8x128xf32>
    %62 = arith.divf %60, %61 : vector<8x128xf32>
    %63 = vector.extract_strided_slice %50 {offsets = [0, 256], sizes = [8, 128], strides = [1, 1]} : vector<8x512xf32> to vector<8x128xf32>
    %64 = math.tanh %63 : vector<8x128xf32>
    %65 = vector.extract_strided_slice %50 {offsets = [0, 384], sizes = [8, 128], strides = [1, 1]} : vector<8x512xf32> to vector<8x128xf32>
    %66 = arith.negf %65 : vector<8x128xf32>
    %67 = math.exp %66 : vector<8x128xf32>
    %cst_27 = arith.constant 1.000000e+00 : f32
    %68 = vector.broadcast %cst_27 : f32 to vector<8x128xf32>
    %69 = arith.addf %68, %67 : vector<8x128xf32>
    %70 = arith.divf %68, %69 : vector<8x128xf32>
    %71 = arith.mulf %62, %44 : vector<8x128xf32>
    %72 = arith.mulf %56, %64 : vector<8x128xf32>
    %73 = arith.addf %71, %72 : vector<8x128xf32>
    %74 = math.tanh %73 : vector<8x128xf32>
    %75 = arith.mulf %70, %74 : vector<8x128xf32>
    %c0_28 = arith.constant 0 : index
    %c0_29 = arith.constant 0 : index
    %76 = vector.load %arg5[%c0_28, %c0_29] : memref<8x128xf32, #tpu.memory_space<vmem>>, vector<8x128xf32>
    tpu.vector_store %arg5[%c0_28, %c0_29], %73 {strides = array<i32>} : memref<8x128xf32, #tpu.memory_space<vmem>>, vector<8x128xf32>,
    %c0_30 = arith.constant 0 : index
    %c0_31 = arith.constant 0 : index
    %77 = vector.load %arg4[%c0_30, %c0_31] : memref<8x128xf32, #tpu.memory_space<vmem>>, vector<8x128xf32>
    tpu.vector_store %arg4[%c0_30, %c0_31], %75 {strides = array<i32>} : memref<8x128xf32, #tpu.memory_space<vmem>>, vector<8x128xf32>,
    %78 = arith.index_cast %c1_i32 : i32 to index
    %c0_32 = arith.constant 0 : index
    %c0_33 = arith.constant 0 : index
    %79 = vector.load %arg3[%78, %c0_32, %c0_33] : memref<8x8x128xf32, #tpu.memory_space<vmem>>, vector<1x8x128xf32>
    %80 = vector.shape_cast %79 : vector<1x8x128xf32> to vector<8x128xf32>
    %81 = vector.shape_cast %75 : vector<8x128xf32> to vector<1x8x128xf32>
    tpu.vector_store %arg3[%78, %c0_32, %c0_33], %81 {strides = array<i32>} : memref<8x8x128xf32, #tpu.memory_space<vmem>>, vector<1x8x128xf32>,
    %c2_i32 = arith.constant 2 : i32
    %c0_34 = arith.constant 0 : index
    %c0_35 = arith.constant 0 : index
    %82 = vector.load %arg4[%c0_34, %c0_35] : memref<8x128xf32, #tpu.memory_space<vmem>>, vector<8x128xf32>
    %c0_36 = arith.constant 0 : index
    %c0_37 = arith.constant 0 : index
    %83 = vector.load %arg5[%c0_36, %c0_37] : memref<8x128xf32, #tpu.memory_space<vmem>>, vector<8x128xf32>
    %84 = arith.index_cast %c2_i32 : i32 to index
    %c0_38 = arith.constant 0 : index
    %c0_39 = arith.constant 0 : index
    %85 = vector.load %arg1[%84, %c0_38, %c0_39] : memref<8x8x512xf32, #tpu.memory_space<vmem>>, vector<1x8x512xf32>
    %86 = vector.shape_cast %85 : vector<1x8x512xf32> to vector<8x512xf32>
    %87 = arith.truncf %82 : vector<8x128xf32> to vector<8x128xbf16>
    %cst_40 = arith.constant dense<0.000000e+00> : vector<8x512xf32>
    %88 = tpu.matmul %87, %3, %cst_40 {dimension_numbers = #tpu.dot_dimension_numbers<[1], [0], [0], [1], [0, 0, 1, 1], [], []>} : vector<8x128xbf16>, vector<128x512xbf16>, vector<8x512xf32> -> vector<8x512xf32>
    %89 = arith.addf %86, %88 : vector<8x512xf32>
    %90 = vector.extract_strided_slice %89 {offsets = [0, 0], sizes = [8, 128], strides = [1, 1]} : vector<8x512xf32> to vector<8x128xf32>
    %91 = arith.negf %90 : vector<8x128xf32>
    %92 = math.exp %91 : vector<8x128xf32>
    %cst_41 = arith.constant 1.000000e+00 : f32
    %93 = vector.broadcast %cst_41 : f32 to vector<8x128xf32>
    %94 = arith.addf %93, %92 : vector<8x128xf32>
    %95 = arith.divf %93, %94 : vector<8x128xf32>
    %96 = vector.extract_strided_slice %89 {offsets = [0, 128], sizes = [8, 128], strides = [1, 1]} : vector<8x512xf32> to vector<8x128xf32>
    %97 = arith.negf %96 : vector<8x128xf32>
    %98 = math.exp %97 : vector<8x128xf32>
    %cst_42 = arith.constant 1.000000e+00 : f32
    %99 = vector.broadcast %cst_42 : f32 to vector<8x128xf32>
    %100 = arith.addf %99, %98 : vector<8x128xf32>
    %101 = arith.divf %99, %100 : vector<8x128xf32>
    %102 = vector.extract_strided_slice %89 {offsets = [0, 256], sizes = [8, 128], strides = [1, 1]} : vector<8x512xf32> to vector<8x128xf32>
    %103 = math.tanh %102 : vector<8x128xf32>
    %104 = vector.extract_strided_slice %89 {offsets = [0, 384], sizes = [8, 128], strides = [1, 1]} : vector<8x512xf32> to vector<8x128xf32>
    %105 = arith.negf %104 : vector<8x128xf32>
    %106 = math.exp %105 : vector<8x128xf32>
    %cst_43 = arith.constant 1.000000e+00 : f32
    %107 = vector.broadcast %cst_43 : f32 to vector<8x128xf32>
    %108 = arith.addf %107, %106 : vector<8x128xf32>
    %109 = arith.divf %107, %108 : vector<8x128xf32>
    %110 = arith.mulf %101, %83 : vector<8x128xf32>
    %111 = arith.mulf %95, %103 : vector<8x128xf32>
    %112 = arith.addf %110, %111 : vector<8x128xf32>
    %113 = math.tanh %112 : vector<8x128xf32>
    %114 = arith.mulf %109, %113 : vector<8x128xf32>
    %c0_44 = arith.constant 0 : index
    %c0_45 = arith.constant 0 : index
    %115 = vector.load %arg5[%c0_44, %c0_45] : memref<8x128xf32, #tpu.memory_space<vmem>>, vector<8x128xf32>
    tpu.vector_store %arg5[%c0_44, %c0_45], %112 {strides = array<i32>} : memref<8x128xf32, #tpu.memory_space<vmem>>, vector<8x128xf32>,
    %c0_46 = arith.constant 0 : index
    %c0_47 = arith.constant 0 : index
    %116 = vector.load %arg4[%c0_46, %c0_47] : memref<8x128xf32, #tpu.memory_space<vmem>>, vector<8x128xf32>
    tpu.vector_store %arg4[%c0_46, %c0_47], %114 {strides = array<i32>} : memref<8x128xf32, #tpu.memory_space<vmem>>, vector<8x128xf32>,
    %117 = arith.index_cast %c2_i32 : i32 to index
    %c0_48 = arith.constant 0 : index
    %c0_49 = arith.constant 0 : index
    %118 = vector.load %arg3[%117, %c0_48, %c0_49] : memref<8x8x128xf32, #tpu.memory_space<vmem>>, vector<1x8x128xf32>
    %119 = vector.shape_cast %118 : vector<1x8x128xf32> to vector<8x128xf32>
    %120 = vector.shape_cast %114 : vector<8x128xf32> to vector<1x8x128xf32>
    tpu.vector_store %arg3[%117, %c0_48, %c0_49], %120 {strides = array<i32>} : memref<8x8x128xf32, #tpu.memory_space<vmem>>, vector<1x8x128xf32>,
    %c3_i32 = arith.constant 3 : i32
    %c0_50 = arith.constant 0 : index
    %c0_51 = arith.constant 0 : index
    %121 = vector.load %arg4[%c0_50, %c0_51] : memref<8x128xf32, #tpu.memory_space<vmem>>, vector<8x128xf32>
    %c0_52 = arith.constant 0 : index
    %c0_53 = arith.constant 0 : index
    %122 = vector.load %arg5[%c0_52, %c0_53] : memref<8x128xf32, #tpu.memory_space<vmem>>, vector<8x128xf32>
    %123 = arith.index_cast %c3_i32 : i32 to index
    %c0_54 = arith.constant 0 : index
    %c0_55 = arith.constant 0 : index
    %124 = vector.load %arg1[%123, %c0_54, %c0_55] : memref<8x8x512xf32, #tpu.memory_space<vmem>>, vector<1x8x512xf32>
    %125 = vector.shape_cast %124 : vector<1x8x512xf32> to vector<8x512xf32>
    %126 = arith.truncf %121 : vector<8x128xf32> to vector<8x128xbf16>
    %cst_56 = arith.constant dense<0.000000e+00> : vector<8x512xf32>
    %127 = tpu.matmul %126, %3, %cst_56 {dimension_numbers = #tpu.dot_dimension_numbers<[1], [0], [0], [1], [0, 0, 1, 1], [], []>} : vector<8x128xbf16>, vector<128x512xbf16>, vector<8x512xf32> -> vector<8x512xf32>
    %128 = arith.addf %125, %127 : vector<8x512xf32>
    %129 = vector.extract_strided_slice %128 {offsets = [0, 0], sizes = [8, 128], strides = [1, 1]} : vector<8x512xf32> to vector<8x128xf32>
    %130 = arith.negf %129 : vector<8x128xf32>
    %131 = math.exp %130 : vector<8x128xf32>
    %cst_57 = arith.constant 1.000000e+00 : f32
    %132 = vector.broadcast %cst_57 : f32 to vector<8x128xf32>
    %133 = arith.addf %132, %131 : vector<8x128xf32>
    %134 = arith.divf %132, %133 : vector<8x128xf32>
    %135 = vector.extract_strided_slice %128 {offsets = [0, 128], sizes = [8, 128], strides = [1, 1]} : vector<8x512xf32> to vector<8x128xf32>
    %136 = arith.negf %135 : vector<8x128xf32>
    %137 = math.exp %136 : vector<8x128xf32>
    %cst_58 = arith.constant 1.000000e+00 : f32
    %138 = vector.broadcast %cst_58 : f32 to vector<8x128xf32>
    %139 = arith.addf %138, %137 : vector<8x128xf32>
    %140 = arith.divf %138, %139 : vector<8x128xf32>
    %141 = vector.extract_strided_slice %128 {offsets = [0, 256], sizes = [8, 128], strides = [1, 1]} : vector<8x512xf32> to vector<8x128xf32>
    %142 = math.tanh %141 : vector<8x128xf32>
    %143 = vector.extract_strided_slice %128 {offsets = [0, 384], sizes = [8, 128], strides = [1, 1]} : vector<8x512xf32> to vector<8x128xf32>
    %144 = arith.negf %143 : vector<8x128xf32>
    %145 = math.exp %144 : vector<8x128xf32>
    %cst_59 = arith.constant 1.000000e+00 : f32
    %146 = vector.broadcast %cst_59 : f32 to vector<8x128xf32>
    %147 = arith.addf %146, %145 : vector<8x128xf32>
    %148 = arith.divf %146, %147 : vector<8x128xf32>
    %149 = arith.mulf %140, %122 : vector<8x128xf32>
    %150 = arith.mulf %134, %142 : vector<8x128xf32>
    %151 = arith.addf %149, %150 : vector<8x128xf32>
    %152 = math.tanh %151 : vector<8x128xf32>
    %153 = arith.mulf %148, %152 : vector<8x128xf32>
    %c0_60 = arith.constant 0 : index
    %c0_61 = arith.constant 0 : index
    %154 = vector.load %arg5[%c0_60, %c0_61] : memref<8x128xf32, #tpu.memory_space<vmem>>, vector<8x128xf32>
    tpu.vector_store %arg5[%c0_60, %c0_61], %151 {strides = array<i32>} : memref<8x128xf32, #tpu.memory_space<vmem>>, vector<8x128xf32>,
    %c0_62 = arith.constant 0 : index
    %c0_63 = arith.constant 0 : index
    %155 = vector.load %arg4[%c0_62, %c0_63] : memref<8x128xf32, #tpu.memory_space<vmem>>, vector<8x128xf32>
    tpu.vector_store %arg4[%c0_62, %c0_63], %153 {strides = array<i32>} : memref<8x128xf32, #tpu.memory_space<vmem>>, vector<8x128xf32>,
    %156 = arith.index_cast %c3_i32 : i32 to index
    %c0_64 = arith.constant 0 : index
    %c0_65 = arith.constant 0 : index
    %157 = vector.load %arg3[%156, %c0_64, %c0_65] : memref<8x8x128xf32, #tpu.memory_space<vmem>>, vector<1x8x128xf32>
    %158 = vector.shape_cast %157 : vector<1x8x128xf32> to vector<8x128xf32>
    %159 = vector.shape_cast %153 : vector<8x128xf32> to vector<1x8x128xf32>
    tpu.vector_store %arg3[%156, %c0_64, %c0_65], %159 {strides = array<i32>} : memref<8x8x128xf32, #tpu.memory_space<vmem>>, vector<1x8x128xf32>,
    %c4_i32 = arith.constant 4 : i32
    %c0_66 = arith.constant 0 : index
    %c0_67 = arith.constant 0 : index
    %160 = vector.load %arg4[%c0_66, %c0_67] : memref<8x128xf32, #tpu.memory_space<vmem>>, vector<8x128xf32>
    %c0_68 = arith.constant 0 : index
    %c0_69 = arith.constant 0 : index
    %161 = vector.load %arg5[%c0_68, %c0_69] : memref<8x128xf32, #tpu.memory_space<vmem>>, vector<8x128xf32>
    %162 = arith.index_cast %c4_i32 : i32 to index
    %c0_70 = arith.constant 0 : index
    %c0_71 = arith.constant 0 : index
    %163 = vector.load %arg1[%162, %c0_70, %c0_71] : memref<8x8x512xf32, #tpu.memory_space<vmem>>, vector<1x8x512xf32>
    %164 = vector.shape_cast %163 : vector<1x8x512xf32> to vector<8x512xf32>
    %165 = arith.truncf %160 : vector<8x128xf32> to vector<8x128xbf16>
    %cst_72 = arith.constant dense<0.000000e+00> : vector<8x512xf32>
    %166 = tpu.matmul %165, %3, %cst_72 {dimension_numbers = #tpu.dot_dimension_numbers<[1], [0], [0], [1], [0, 0, 1, 1], [], []>} : vector<8x128xbf16>, vector<128x512xbf16>, vector<8x512xf32> -> vector<8x512xf32>
    %167 = arith.addf %164, %166 : vector<8x512xf32>
    %168 = vector.extract_strided_slice %167 {offsets = [0, 0], sizes = [8, 128], strides = [1, 1]} : vector<8x512xf32> to vector<8x128xf32>
    %169 = arith.negf %168 : vector<8x128xf32>
    %170 = math.exp %169 : vector<8x128xf32>
    %cst_73 = arith.constant 1.000000e+00 : f32
    %171 = vector.broadcast %cst_73 : f32 to vector<8x128xf32>
    %172 = arith.addf %171, %170 : vector<8x128xf32>
    %173 = arith.divf %171, %172 : vector<8x128xf32>
    %174 = vector.extract_strided_slice %167 {offsets = [0, 128], sizes = [8, 128], strides = [1, 1]} : vector<8x512xf32> to vector<8x128xf32>
    %175 = arith.negf %174 : vector<8x128xf32>
    %176 = math.exp %175 : vector<8x128xf32>
    %cst_74 = arith.constant 1.000000e+00 : f32
    %177 = vector.broadcast %cst_74 : f32 to vector<8x128xf32>
    %178 = arith.addf %177, %176 : vector<8x128xf32>
    %179 = arith.divf %177, %178 : vector<8x128xf32>
    %180 = vector.extract_strided_slice %167 {offsets = [0, 256], sizes = [8, 128], strides = [1, 1]} : vector<8x512xf32> to vector<8x128xf32>
    %181 = math.tanh %180 : vector<8x128xf32>
    %182 = vector.extract_strided_slice %167 {offsets = [0, 384], sizes = [8, 128], strides = [1, 1]} : vector<8x512xf32> to vector<8x128xf32>
    %183 = arith.negf %182 : vector<8x128xf32>
    %184 = math.exp %183 : vector<8x128xf32>
    %cst_75 = arith.constant 1.000000e+00 : f32
    %185 = vector.broadcast %cst_75 : f32 to vector<8x128xf32>
    %186 = arith.addf %185, %184 : vector<8x128xf32>
    %187 = arith.divf %185, %186 : vector<8x128xf32>
    %188 = arith.mulf %179, %161 : vector<8x128xf32>
    %189 = arith.mulf %173, %181 : vector<8x128xf32>
    %190 = arith.addf %188, %189 : vector<8x128xf32>
    %191 = math.tanh %190 : vector<8x128xf32>
    %192 = arith.mulf %187, %191 : vector<8x128xf32>
    %c0_76 = arith.constant 0 : index
    %c0_77 = arith.constant 0 : index
    %193 = vector.load %arg5[%c0_76, %c0_77] : memref<8x128xf32, #tpu.memory_space<vmem>>, vector<8x128xf32>
    tpu.vector_store %arg5[%c0_76, %c0_77], %190 {strides = array<i32>} : memref<8x128xf32, #tpu.memory_space<vmem>>, vector<8x128xf32>,
    %c0_78 = arith.constant 0 : index
    %c0_79 = arith.constant 0 : index
    %194 = vector.load %arg4[%c0_78, %c0_79] : memref<8x128xf32, #tpu.memory_space<vmem>>, vector<8x128xf32>
    tpu.vector_store %arg4[%c0_78, %c0_79], %192 {strides = array<i32>} : memref<8x128xf32, #tpu.memory_space<vmem>>, vector<8x128xf32>,
    %195 = arith.index_cast %c4_i32 : i32 to index
    %c0_80 = arith.constant 0 : index
    %c0_81 = arith.constant 0 : index
    %196 = vector.load %arg3[%195, %c0_80, %c0_81] : memref<8x8x128xf32, #tpu.memory_space<vmem>>, vector<1x8x128xf32>
    %197 = vector.shape_cast %196 : vector<1x8x128xf32> to vector<8x128xf32>
    %198 = vector.shape_cast %192 : vector<8x128xf32> to vector<1x8x128xf32>
    tpu.vector_store %arg3[%195, %c0_80, %c0_81], %198 {strides = array<i32>} : memref<8x8x128xf32, #tpu.memory_space<vmem>>, vector<1x8x128xf32>,
    %c5_i32 = arith.constant 5 : i32
    %c0_82 = arith.constant 0 : index
    %c0_83 = arith.constant 0 : index
    %199 = vector.load %arg4[%c0_82, %c0_83] : memref<8x128xf32, #tpu.memory_space<vmem>>, vector<8x128xf32>
    %c0_84 = arith.constant 0 : index
    %c0_85 = arith.constant 0 : index
    %200 = vector.load %arg5[%c0_84, %c0_85] : memref<8x128xf32, #tpu.memory_space<vmem>>, vector<8x128xf32>
    %201 = arith.index_cast %c5_i32 : i32 to index
    %c0_86 = arith.constant 0 : index
    %c0_87 = arith.constant 0 : index
    %202 = vector.load %arg1[%201, %c0_86, %c0_87] : memref<8x8x512xf32, #tpu.memory_space<vmem>>, vector<1x8x512xf32>
    %203 = vector.shape_cast %202 : vector<1x8x512xf32> to vector<8x512xf32>
    %204 = arith.truncf %199 : vector<8x128xf32> to vector<8x128xbf16>
    %cst_88 = arith.constant dense<0.000000e+00> : vector<8x512xf32>
    %205 = tpu.matmul %204, %3, %cst_88 {dimension_numbers = #tpu.dot_dimension_numbers<[1], [0], [0], [1], [0, 0, 1, 1], [], []>} : vector<8x128xbf16>, vector<128x512xbf16>, vector<8x512xf32> -> vector<8x512xf32>
    %206 = arith.addf %203, %205 : vector<8x512xf32>
    %207 = vector.extract_strided_slice %206 {offsets = [0, 0], sizes = [8, 128], strides = [1, 1]} : vector<8x512xf32> to vector<8x128xf32>
    %208 = arith.negf %207 : vector<8x128xf32>
    %209 = math.exp %208 : vector<8x128xf32>
    %cst_89 = arith.constant 1.000000e+00 : f32
    %210 = vector.broadcast %cst_89 : f32 to vector<8x128xf32>
    %211 = arith.addf %210, %209 : vector<8x128xf32>
    %212 = arith.divf %210, %211 : vector<8x128xf32>
    %213 = vector.extract_strided_slice %206 {offsets = [0, 128], sizes = [8, 128], strides = [1, 1]} : vector<8x512xf32> to vector<8x128xf32>
    %214 = arith.negf %213 : vector<8x128xf32>
    %215 = math.exp %214 : vector<8x128xf32>
    %cst_90 = arith.constant 1.000000e+00 : f32
    %216 = vector.broadcast %cst_90 : f32 to vector<8x128xf32>
    %217 = arith.addf %216, %215 : vector<8x128xf32>
    %218 = arith.divf %216, %217 : vector<8x128xf32>
    %219 = vector.extract_strided_slice %206 {offsets = [0, 256], sizes = [8, 128], strides = [1, 1]} : vector<8x512xf32> to vector<8x128xf32>
    %220 = math.tanh %219 : vector<8x128xf32>
    %221 = vector.extract_strided_slice %206 {offsets = [0, 384], sizes = [8, 128], strides = [1, 1]} : vector<8x512xf32> to vector<8x128xf32>
    %222 = arith.negf %221 : vector<8x128xf32>
    %223 = math.exp %222 : vector<8x128xf32>
    %cst_91 = arith.constant 1.000000e+00 : f32
    %224 = vector.broadcast %cst_91 : f32 to vector<8x128xf32>
    %225 = arith.addf %224, %223 : vector<8x128xf32>
    %226 = arith.divf %224, %225 : vector<8x128xf32>
    %227 = arith.mulf %218, %200 : vector<8x128xf32>
    %228 = arith.mulf %212, %220 : vector<8x128xf32>
    %229 = arith.addf %227, %228 : vector<8x128xf32>
    %230 = math.tanh %229 : vector<8x128xf32>
    %231 = arith.mulf %226, %230 : vector<8x128xf32>
    %c0_92 = arith.constant 0 : index
    %c0_93 = arith.constant 0 : index
    %232 = vector.load %arg5[%c0_92, %c0_93] : memref<8x128xf32, #tpu.memory_space<vmem>>, vector<8x128xf32>
    tpu.vector_store %arg5[%c0_92, %c0_93], %229 {strides = array<i32>} : memref<8x128xf32, #tpu.memory_space<vmem>>, vector<8x128xf32>,
    %c0_94 = arith.constant 0 : index
    %c0_95 = arith.constant 0 : index
    %233 = vector.load %arg4[%c0_94, %c0_95] : memref<8x128xf32, #tpu.memory_space<vmem>>, vector<8x128xf32>
    tpu.vector_store %arg4[%c0_94, %c0_95], %231 {strides = array<i32>} : memref<8x128xf32, #tpu.memory_space<vmem>>, vector<8x128xf32>,
    %234 = arith.index_cast %c5_i32 : i32 to index
    %c0_96 = arith.constant 0 : index
    %c0_97 = arith.constant 0 : index
    %235 = vector.load %arg3[%234, %c0_96, %c0_97] : memref<8x8x128xf32, #tpu.memory_space<vmem>>, vector<1x8x128xf32>
    %236 = vector.shape_cast %235 : vector<1x8x128xf32> to vector<8x128xf32>
    %237 = vector.shape_cast %231 : vector<8x128xf32> to vector<1x8x128xf32>
    tpu.vector_store %arg3[%234, %c0_96, %c0_97], %237 {strides = array<i32>} : memref<8x8x128xf32, #tpu.memory_space<vmem>>, vector<1x8x128xf32>,
    %c6_i32 = arith.constant 6 : i32
    %c0_98 = arith.constant 0 : index
    %c0_99 = arith.constant 0 : index
    %238 = vector.load %arg4[%c0_98, %c0_99] : memref<8x128xf32, #tpu.memory_space<vmem>>, vector<8x128xf32>
    %c0_100 = arith.constant 0 : index
    %c0_101 = arith.constant 0 : index
    %239 = vector.load %arg5[%c0_100, %c0_101] : memref<8x128xf32, #tpu.memory_space<vmem>>, vector<8x128xf32>
    %240 = arith.index_cast %c6_i32 : i32 to index
    %c0_102 = arith.constant 0 : index
    %c0_103 = arith.constant 0 : index
    %241 = vector.load %arg1[%240, %c0_102, %c0_103] : memref<8x8x512xf32, #tpu.memory_space<vmem>>, vector<1x8x512xf32>
    %242 = vector.shape_cast %241 : vector<1x8x512xf32> to vector<8x512xf32>
    %243 = arith.truncf %238 : vector<8x128xf32> to vector<8x128xbf16>
    %cst_104 = arith.constant dense<0.000000e+00> : vector<8x512xf32>
    %244 = tpu.matmul %243, %3, %cst_104 {dimension_numbers = #tpu.dot_dimension_numbers<[1], [0], [0], [1], [0, 0, 1, 1], [], []>} : vector<8x128xbf16>, vector<128x512xbf16>, vector<8x512xf32> -> vector<8x512xf32>
    %245 = arith.addf %242, %244 : vector<8x512xf32>
    %246 = vector.extract_strided_slice %245 {offsets = [0, 0], sizes = [8, 128], strides = [1, 1]} : vector<8x512xf32> to vector<8x128xf32>
    %247 = arith.negf %246 : vector<8x128xf32>
    %248 = math.exp %247 : vector<8x128xf32>
    %cst_105 = arith.constant 1.000000e+00 : f32
    %249 = vector.broadcast %cst_105 : f32 to vector<8x128xf32>
    %250 = arith.addf %249, %248 : vector<8x128xf32>
    %251 = arith.divf %249, %250 : vector<8x128xf32>
    %252 = vector.extract_strided_slice %245 {offsets = [0, 128], sizes = [8, 128], strides = [1, 1]} : vector<8x512xf32> to vector<8x128xf32>
    %253 = arith.negf %252 : vector<8x128xf32>
    %254 = math.exp %253 : vector<8x128xf32>
    %cst_106 = arith.constant 1.000000e+00 : f32
    %255 = vector.broadcast %cst_106 : f32 to vector<8x128xf32>
    %256 = arith.addf %255, %254 : vector<8x128xf32>
    %257 = arith.divf %255, %256 : vector<8x128xf32>
    %258 = vector.extract_strided_slice %245 {offsets = [0, 256], sizes = [8, 128], strides = [1, 1]} : vector<8x512xf32> to vector<8x128xf32>
    %259 = math.tanh %258 : vector<8x128xf32>
    %260 = vector.extract_strided_slice %245 {offsets = [0, 384], sizes = [8, 128], strides = [1, 1]} : vector<8x512xf32> to vector<8x128xf32>
    %261 = arith.negf %260 : vector<8x128xf32>
    %262 = math.exp %261 : vector<8x128xf32>
    %cst_107 = arith.constant 1.000000e+00 : f32
    %263 = vector.broadcast %cst_107 : f32 to vector<8x128xf32>
    %264 = arith.addf %263, %262 : vector<8x128xf32>
    %265 = arith.divf %263, %264 : vector<8x128xf32>
    %266 = arith.mulf %257, %239 : vector<8x128xf32>
    %267 = arith.mulf %251, %259 : vector<8x128xf32>
    %268 = arith.addf %266, %267 : vector<8x128xf32>
    %269 = math.tanh %268 : vector<8x128xf32>
    %270 = arith.mulf %265, %269 : vector<8x128xf32>
    %c0_108 = arith.constant 0 : index
    %c0_109 = arith.constant 0 : index
    %271 = vector.load %arg5[%c0_108, %c0_109] : memref<8x128xf32, #tpu.memory_space<vmem>>, vector<8x128xf32>
    tpu.vector_store %arg5[%c0_108, %c0_109], %268 {strides = array<i32>} : memref<8x128xf32, #tpu.memory_space<vmem>>, vector<8x128xf32>,
    %c0_110 = arith.constant 0 : index
    %c0_111 = arith.constant 0 : index
    %272 = vector.load %arg4[%c0_110, %c0_111] : memref<8x128xf32, #tpu.memory_space<vmem>>, vector<8x128xf32>
    tpu.vector_store %arg4[%c0_110, %c0_111], %270 {strides = array<i32>} : memref<8x128xf32, #tpu.memory_space<vmem>>, vector<8x128xf32>,
    %273 = arith.index_cast %c6_i32 : i32 to index
    %c0_112 = arith.constant 0 : index
    %c0_113 = arith.constant 0 : index
    %274 = vector.load %arg3[%273, %c0_112, %c0_113] : memref<8x8x128xf32, #tpu.memory_space<vmem>>, vector<1x8x128xf32>
    %275 = vector.shape_cast %274 : vector<1x8x128xf32> to vector<8x128xf32>
    %276 = vector.shape_cast %270 : vector<8x128xf32> to vector<1x8x128xf32>
    tpu.vector_store %arg3[%273, %c0_112, %c0_113], %276 {strides = array<i32>} : memref<8x8x128xf32, #tpu.memory_space<vmem>>, vector<1x8x128xf32>,
    %c7_i32 = arith.constant 7 : i32
    %c0_114 = arith.constant 0 : index
    %c0_115 = arith.constant 0 : index
    %277 = vector.load %arg4[%c0_114, %c0_115] : memref<8x128xf32, #tpu.memory_space<vmem>>, vector<8x128xf32>
    %c0_116 = arith.constant 0 : index
    %c0_117 = arith.constant 0 : index
    %278 = vector.load %arg5[%c0_116, %c0_117] : memref<8x128xf32, #tpu.memory_space<vmem>>, vector<8x128xf32>
    %279 = arith.index_cast %c7_i32 : i32 to index
    %c0_118 = arith.constant 0 : index
    %c0_119 = arith.constant 0 : index
    %280 = vector.load %arg1[%279, %c0_118, %c0_119] : memref<8x8x512xf32, #tpu.memory_space<vmem>>, vector<1x8x512xf32>
    %281 = vector.shape_cast %280 : vector<1x8x512xf32> to vector<8x512xf32>
    %282 = arith.truncf %277 : vector<8x128xf32> to vector<8x128xbf16>
    %cst_120 = arith.constant dense<0.000000e+00> : vector<8x512xf32>
    %283 = tpu.matmul %282, %3, %cst_120 {dimension_numbers = #tpu.dot_dimension_numbers<[1], [0], [0], [1], [0, 0, 1, 1], [], []>} : vector<8x128xbf16>, vector<128x512xbf16>, vector<8x512xf32> -> vector<8x512xf32>
    %284 = arith.addf %281, %283 : vector<8x512xf32>
    %285 = vector.extract_strided_slice %284 {offsets = [0, 0], sizes = [8, 128], strides = [1, 1]} : vector<8x512xf32> to vector<8x128xf32>
    %286 = arith.negf %285 : vector<8x128xf32>
    %287 = math.exp %286 : vector<8x128xf32>
    %cst_121 = arith.constant 1.000000e+00 : f32
    %288 = vector.broadcast %cst_121 : f32 to vector<8x128xf32>
    %289 = arith.addf %288, %287 : vector<8x128xf32>
    %290 = arith.divf %288, %289 : vector<8x128xf32>
    %291 = vector.extract_strided_slice %284 {offsets = [0, 128], sizes = [8, 128], strides = [1, 1]} : vector<8x512xf32> to vector<8x128xf32>
    %292 = arith.negf %291 : vector<8x128xf32>
    %293 = math.exp %292 : vector<8x128xf32>
    %cst_122 = arith.constant 1.000000e+00 : f32
    %294 = vector.broadcast %cst_122 : f32 to vector<8x128xf32>
    %295 = arith.addf %294, %293 : vector<8x128xf32>
    %296 = arith.divf %294, %295 : vector<8x128xf32>
    %297 = vector.extract_strided_slice %284 {offsets = [0, 256], sizes = [8, 128], strides = [1, 1]} : vector<8x512xf32> to vector<8x128xf32>
    %298 = math.tanh %297 : vector<8x128xf32>
    %299 = vector.extract_strided_slice %284 {offsets = [0, 384], sizes = [8, 128], strides = [1, 1]} : vector<8x512xf32> to vector<8x128xf32>
    %300 = arith.negf %299 : vector<8x128xf32>
    %301 = math.exp %300 : vector<8x128xf32>
    %cst_123 = arith.constant 1.000000e+00 : f32
    %302 = vector.broadcast %cst_123 : f32 to vector<8x128xf32>
    %303 = arith.addf %302, %301 : vector<8x128xf32>
    %304 = arith.divf %302, %303 : vector<8x128xf32>
    %305 = arith.mulf %296, %278 : vector<8x128xf32>
    %306 = arith.mulf %290, %298 : vector<8x128xf32>
    %307 = arith.addf %305, %306 : vector<8x128xf32>
    %308 = math.tanh %307 : vector<8x128xf32>
    %309 = arith.mulf %304, %308 : vector<8x128xf32>
    %c0_124 = arith.constant 0 : index
    %c0_125 = arith.constant 0 : index
    %310 = vector.load %arg5[%c0_124, %c0_125] : memref<8x128xf32, #tpu.memory_space<vmem>>, vector<8x128xf32>
    tpu.vector_store %arg5[%c0_124, %c0_125], %307 {strides = array<i32>} : memref<8x128xf32, #tpu.memory_space<vmem>>, vector<8x128xf32>,
    %c0_126 = arith.constant 0 : index
    %c0_127 = arith.constant 0 : index
    %311 = vector.load %arg4[%c0_126, %c0_127] : memref<8x128xf32, #tpu.memory_space<vmem>>, vector<8x128xf32>
    tpu.vector_store %arg4[%c0_126, %c0_127], %309 {strides = array<i32>} : memref<8x128xf32, #tpu.memory_space<vmem>>, vector<8x128xf32>,
    %312 = arith.index_cast %c7_i32 : i32 to index
    %c0_128 = arith.constant 0 : index
    %c0_129 = arith.constant 0 : index
    %313 = vector.load %arg3[%312, %c0_128, %c0_129] : memref<8x8x128xf32, #tpu.memory_space<vmem>>, vector<1x8x128xf32>
    %314 = vector.shape_cast %313 : vector<1x8x128xf32> to vector<8x128xf32>
    %315 = vector.shape_cast %309 : vector<8x128xf32> to vector<1x8x128xf32>
    tpu.vector_store %arg3[%312, %c0_128, %c0_129], %315 {strides = array<i32>} : memref<8x8x128xf32, #tpu.memory_space<vmem>>, vector<1x8x128xf32>,
    %c8_i32 = arith.constant 8 : i32
    return
  }
  func.func @transform_0(%arg0: i32) -> (i32, i32, i32) {
    %c0_i32 = arith.constant 0 : i32
    %c0_i32_0 = arith.constant 0 : i32
    %c0_i32_1 = arith.constant 0 : i32
    return %arg0, %c0_i32, %c0_i32_0 : i32, i32, i32
  }
  func.func @transform_1(%arg0: i32) -> (i32, i32) {
    %c0_i32 = arith.constant 0 : i32
    %c0_i32_0 = arith.constant 0 : i32
    %c0_i32_1 = arith.constant 0 : i32
    return %c0_i32, %c0_i32_0 : i32, i32
  }
  func.func @transform_2(%arg0: i32) -> (i32, i32, i32) {
    %c0_i32 = arith.constant 0 : i32
    %c0_i32_0 = arith.constant 0 : i32
    %c0_i32_1 = arith.constant 0 : i32
    return %arg0, %c0_i32, %c0_i32_0 : i32, i32, i32
  }
}

module attributes {stable_mosaic.version = 11 : i64} {
  func.func @matmul_bias_kernel(%arg0: i32, %arg1: memref<64x128xf32, #tpu.memory_space<vmem>>, %arg2: memref<128x512xbf16, #tpu.memory_space<vmem>>, %arg3: memref<1x512xf32, #tpu.memory_space<vmem>>, %arg4: memref<64x512xf32, #tpu.memory_space<vmem>>) attributes {dimension_semantics = [#tpu.dimension_semantics<parallel>], iteration_bounds = array<i64: 1>, scalar_prefetch = 0 : i64, scratch_operands = 0 : i64, tpu.core_type = #tpu.core_type<tc>, window_params = [{transform_indices = @transform_0, window_bounds = array<i64: 64, 128>}, {pipeline_mode = #tpu.pipeline_mode<synchronous>, transform_indices = @transform_1, window_bounds = array<i64: 128, 512>}, {pipeline_mode = #tpu.pipeline_mode<synchronous>, transform_indices = @transform_2, window_bounds = array<i64: 1, 512>}, {transform_indices = @transform_3, window_bounds = array<i64: 64, 512>}]} {
    %c0 = arith.constant 0 : index
    %c0_0 = arith.constant 0 : index
    %0 = vector.load %arg1[%c0, %c0_0] : memref<64x128xf32, #tpu.memory_space<vmem>>, vector<64x128xf32>
    %1 = arith.truncf %0 : vector<64x128xf32> to vector<64x128xbf16>
    %c0_1 = arith.constant 0 : index
    %c0_2 = arith.constant 0 : index
    %2 = vector.load %arg2[%c0_1, %c0_2] : memref<128x512xbf16, #tpu.memory_space<vmem>>, vector<128x512xbf16>
    %cst = arith.constant dense<0.000000e+00> : vector<64x512xf32>
    %3 = tpu.matmul %1, %2, %cst {dimension_numbers = #tpu.dot_dimension_numbers<[1], [0], [0], [1], [0, 0, 1, 1], [], []>} : vector<64x128xbf16>, vector<128x512xbf16>, vector<64x512xf32> -> vector<64x512xf32>
    %c0_3 = arith.constant 0 : index
    %c0_4 = arith.constant 0 : index
    %4 = vector.load %arg3[%c0_3, %c0_4] : memref<1x512xf32, #tpu.memory_space<vmem>>, vector<1x512xf32>
    %5 = vector.broadcast %4 : vector<1x512xf32> to vector<64x512xf32>
    %6 = arith.addf %3, %5 : vector<64x512xf32>
    %c0_5 = arith.constant 0 : index
    %c0_6 = arith.constant 0 : index
    %7 = vector.load %arg4[%c0_5, %c0_6] : memref<64x512xf32, #tpu.memory_space<vmem>>, vector<64x512xf32>
    tpu.vector_store %arg4[%c0_5, %c0_6], %6 {strides = array<i32>} : memref<64x512xf32, #tpu.memory_space<vmem>>, vector<64x512xf32>,
    return
  }
  func.func @transform_0(%arg0: i32) -> (i32, i32) {
    %c0_i32 = arith.constant 0 : i32
    %c0_i32_0 = arith.constant 0 : i32
    return %arg0, %c0_i32 : i32, i32
  }
  func.func @transform_1(%arg0: i32) -> (i32, i32) {
    %c0_i32 = arith.constant 0 : i32
    %c0_i32_0 = arith.constant 0 : i32
    %c0_i32_1 = arith.constant 0 : i32
    return %c0_i32, %c0_i32_0 : i32, i32
  }
  func.func @transform_2(%arg0: i32) -> (i32, i32) {
    %c0_i32 = arith.constant 0 : i32
    %c0_i32_0 = arith.constant 0 : i32
    %c0_i32_1 = arith.constant 0 : i32
    return %c0_i32, %c0_i32_0 : i32, i32
  }
  func.func @transform_3(%arg0: i32) -> (i32, i32) {
    %c0_i32 = arith.constant 0 : i32
    %c0_i32_0 = arith.constant 0 : i32
    return %arg0, %c0_i32 : i32, i32
  }
}

module attributes {stable_mosaic.version = 11 : i64} {
  func.func @matmul_bias_kernel(%arg0: i32, %arg1: memref<64x128xf32, #tpu.memory_space<vmem>>, %arg2: memref<128x128xbf16, #tpu.memory_space<vmem>>, %arg3: memref<1x128xf32, #tpu.memory_space<vmem>>, %arg4: memref<64x128xf32, #tpu.memory_space<vmem>>) attributes {dimension_semantics = [#tpu.dimension_semantics<parallel>], iteration_bounds = array<i64: 1>, scalar_prefetch = 0 : i64, scratch_operands = 0 : i64, tpu.core_type = #tpu.core_type<tc>, window_params = [{transform_indices = @transform_0, window_bounds = array<i64: 64, 128>}, {pipeline_mode = #tpu.pipeline_mode<synchronous>, transform_indices = @transform_1, window_bounds = array<i64: 128, 128>}, {pipeline_mode = #tpu.pipeline_mode<synchronous>, transform_indices = @transform_2, window_bounds = array<i64: 1, 128>}, {transform_indices = @transform_3, window_bounds = array<i64: 64, 128>}]} {
    %c0 = arith.constant 0 : index
    %c0_0 = arith.constant 0 : index
    %0 = vector.load %arg1[%c0, %c0_0] : memref<64x128xf32, #tpu.memory_space<vmem>>, vector<64x128xf32>
    %1 = arith.truncf %0 : vector<64x128xf32> to vector<64x128xbf16>
    %c0_1 = arith.constant 0 : index
    %c0_2 = arith.constant 0 : index
    %2 = vector.load %arg2[%c0_1, %c0_2] : memref<128x128xbf16, #tpu.memory_space<vmem>>, vector<128x128xbf16>
    %cst = arith.constant dense<0.000000e+00> : vector<64x128xf32>
    %3 = tpu.matmul %1, %2, %cst {dimension_numbers = #tpu.dot_dimension_numbers<[1], [0], [0], [1], [0, 0, 1, 1], [], []>} : vector<64x128xbf16>, vector<128x128xbf16>, vector<64x128xf32> -> vector<64x128xf32>
    %c0_3 = arith.constant 0 : index
    %c0_4 = arith.constant 0 : index
    %4 = vector.load %arg3[%c0_3, %c0_4] : memref<1x128xf32, #tpu.memory_space<vmem>>, vector<1x128xf32>
    %5 = vector.broadcast %4 : vector<1x128xf32> to vector<64x128xf32>
    %6 = arith.addf %3, %5 : vector<64x128xf32>
    %c0_5 = arith.constant 0 : index
    %c0_6 = arith.constant 0 : index
    %7 = vector.load %arg4[%c0_5, %c0_6] : memref<64x128xf32, #tpu.memory_space<vmem>>, vector<64x128xf32>
    tpu.vector_store %arg4[%c0_5, %c0_6], %6 {strides = array<i32>} : memref<64x128xf32, #tpu.memory_space<vmem>>, vector<64x128xf32>,
    return
  }
  func.func @transform_0(%arg0: i32) -> (i32, i32) {
    %c0_i32 = arith.constant 0 : i32
    %c0_i32_0 = arith.constant 0 : i32
    return %arg0, %c0_i32 : i32, i32
  }
  func.func @transform_1(%arg0: i32) -> (i32, i32) {
    %c0_i32 = arith.constant 0 : i32
    %c0_i32_0 = arith.constant 0 : i32
    %c0_i32_1 = arith.constant 0 : i32
    return %c0_i32, %c0_i32_0 : i32, i32
  }
  func.func @transform_2(%arg0: i32) -> (i32, i32) {
    %c0_i32 = arith.constant 0 : i32
    %c0_i32_0 = arith.constant 0 : i32
    %c0_i32_1 = arith.constant 0 : i32
    return %c0_i32, %c0_i32_0 : i32, i32
  }
  func.func @transform_3(%arg0: i32) -> (i32, i32) {
    %c0_i32 = arith.constant 0 : i32
    %c0_i32_0 = arith.constant 0 : i32
    return %arg0, %c0_i32 : i32, i32
  }
}

</mosaic_0001>

<llo_original>
// kernel: lstm_model_forward.5
$region0: #{lstm_model_forward.5}
  #allocation0 [shape = 'u32[]', space=smem, size = 0x4, offset = 0x4, fixed_abs, tag = 'smem constant byte address 0x4 - core index']
  #allocation1 [shape = 'u32[72,128]{1,0:T(1,128)}', space=vmem, size = 0x9000, scoped, tag = 'internal scratch']
  %s0 = inlined_call_operand.vmem [shape: f32[64,16], index: 0, kind: input, shape index: {}]
  %s1 = inlined_call_operand.vmem [shape: bf16[16,512], index: 1, kind: input, shape index: {}]
  %s2 = inlined_call_operand.vmem [shape: f32[1,512], index: 2, kind: input, shape index: {}]
  %s3 = inlined_call_operand.vmem [shape: f32[64,512], index: 3, kind: output, shape index: {}]
  %s4 = sld [smem:[#allocation0]]
  $region22: #{lstm_model_forward.5} parent=0
    _
  %s6 = ssub.s32 1, %s4
  %s7 = scalar_select 0, %s6, %s4
  // Predicated region
  $region2: #{lstm_model_forward.5} parent=0 // pred_check
    _
  $region3: #{lstm_model_forward.5} parent=0 // pred_check_branch
    %9 = sbr.rel (0) target = $region5
  $region4: #{lstm_model_forward.5} parent=0 // pred_region
    _
  $region5: #{lstm_model_forward.5} parent=0 // pred_fallthru
    _
  // Predicated region
  $region6: #{lstm_model_forward.5} parent=0 // pred_check
    _
  $region7: #{lstm_model_forward.5} parent=0 // pred_check_branch
    %11 = sbr.rel (0) target = $region9
  $region8: #{lstm_model_forward.5} parent=0 // pred_region
    _
  $region9: #{lstm_model_forward.5} parent=0 // pred_fallthru
    _
  // Predicated region
  $region10: #{lstm_model_forward.5} parent=0 // pred_check
    _
  $region11: #{lstm_model_forward.5} parent=0 // pred_check_branch
    %13 = sbr.rel (0) target = $region13
  $region12: #{lstm_model_forward.5} parent=0 // pred_region
    _
  $region13: #{lstm_model_forward.5} parent=0 // pred_fallthru
    _
  %v15 = vld [vmem:[%s0] sm:$0xff]
  %v16 = vld [vmem:[%s0 + $0x8] sm:$0xff]
  %v17 = vld [vmem:[%s0 + $0x10] sm:$0xff]
  %v18 = vld [vmem:[%s0 + $0x18] sm:$0xff]
  %v19 = vld [vmem:[%s0 + $0x20] sm:$0xff]
  %v20 = vld [vmem:[%s0 + $0x28] sm:$0xff]
  %v21 = vld [vmem:[%s0 + $0x30] sm:$0xff]
  %v22 = vld [vmem:[%s0 + $0x38] sm:$0xff]
  %v23 = vpack.c.bf16 %v16, %v15
  %v24 = vpack.c.bf16 %v18, %v17
  %v25 = vpack.c.bf16 %v20, %v19
  %v26 = vpack.c.bf16 %v22, %v21
  %v27 = vld [vmem:[%s1] sm:$0xff]
  %v28 = vld [vmem:[%s1 + $0x8] sm:$0xff]
  %v29 = vld [vmem:[%s1 + $0x10] sm:$0xff]
  %v30 = vld [vmem:[%s1 + $0x18] sm:$0xff]
  %v31 = vld [vmem:[%s2] sm:$0xf]
  %v33 = vperm.slane %v31, 0
  %v34 = vperm.slane %v31, 1
  %v35 = vperm.slane %v31, 2
  %v36 = vperm.slane %v31, 3
  %v45 = vunpack.c.l.b16 %v27
  %v46 = vunpack.c.h.b16 %v27
  %v47 = vunpack.c.l.b16 %v28
  %v48 = vunpack.c.h.b16 %v28
  %v49 = vunpack.c.l.b16 %v29
  %v50 = vunpack.c.h.b16 %v29
  %v51 = vunpack.c.l.b16 %v30
  %v52 = vunpack.c.h.b16 %v30
  %v53 = vpack.c.b16 %v49, %v45
  %v54 = vpack.c.b16 %v50, %v46
  %v55 = vpack.c.b16 %v51, %v47
  %v56 = vpack.c.b16 %v52, %v48
  %vm61 = vcmask 130048
  %v63 = vsel %vm61, %v23, 0
  %v66 = vsel %vm61, %v24, 0
  %v69 = vsel %vm61, %v25, 0
  %v72 = vsel %vm61, %v26, 0
  %74 = vmatpush.bf16.msra.mxu0 0
  %75 = vmatpush.bf16.msra.mxu0 0
  %76 = vmatpush.bf16.msra.mxu0 0
  %77 = vmatpush.bf16.msra.mxu0 0
  %78 = vmatpush.bf16.msra.mxu0 0
  %79 = vmatpush.bf16.msra.mxu0 0
  %80 = vmatpush.bf16.msra.mxu0 0
  %81 = vmatpush.bf16.msra.mxu0 %v53
  %82 = vmatmul.bf16.gmra.mxu0 %v63
  %v83 = vpop.f32.mrf.mxu0
  %v84 = vadd.f32 %v33, %v83
  %v85 = vpop.f32.mrf.mxu0
  %v86 = vadd.f32 %v33, %v85
  %87 = vmatmul.bf16.gmra.mxu0 %v66
  %v88 = vpop.f32.mrf.mxu0
  %v89 = vadd.f32 %v33, %v88
  %v90 = vpop.f32.mrf.mxu0
  %v91 = vadd.f32 %v33, %v90
  %92 = vmatmul.bf16.gmra.mxu0 %v69
  %v93 = vpop.f32.mrf.mxu0
  %v94 = vadd.f32 %v33, %v93
  %v95 = vpop.f32.mrf.mxu0
  %v96 = vadd.f32 %v33, %v95
  %97 = vmatmul.bf16.gmra.mxu0 %v72
  %v98 = vpop.f32.mrf.mxu0
  %v99 = vadd.f32 %v33, %v98
  %v100 = vpop.f32.mrf.mxu0
  %v101 = vadd.f32 %v33, %v100
  %102 = vdwg.mxu0
  %103 = vmatpush.bf16.msra.mxu0 0
  %104 = vmatpush.bf16.msra.mxu0 0
  %105 = vmatpush.bf16.msra.mxu0 0
  %106 = vmatpush.bf16.msra.mxu0 0
  %107 = vmatpush.bf16.msra.mxu0 0
  %108 = vmatpush.bf16.msra.mxu0 0
  %109 = vmatpush.bf16.msra.mxu0 0
  %110 = vmatpush.bf16.msra.mxu0 %v54
  %111 = vmatmul.bf16.gmra.mxu0 %v63
  %v112 = vpop.f32.mrf.mxu0
  %v113 = vadd.f32 %v34, %v112
  %v114 = vpop.f32.mrf.mxu0
  %v115 = vadd.f32 %v34, %v114
  %116 = vmatmul.bf16.gmra.mxu0 %v66
  %v117 = vpop.f32.mrf.mxu0
  %v118 = vadd.f32 %v34, %v117
  %v119 = vpop.f32.mrf.mxu0
  %v120 = vadd.f32 %v34, %v119
  %121 = vmatmul.bf16.gmra.mxu0 %v69
  %v122 = vpop.f32.mrf.mxu0
  %v123 = vadd.f32 %v34, %v122
  %v124 = vpop.f32.mrf.mxu0
  %v125 = vadd.f32 %v34, %v124
  %126 = vmatmul.bf16.gmra.mxu0 %v72
  %v127 = vpop.f32.mrf.mxu0
  %v128 = vadd.f32 %v34, %v127
  %v129 = vpop.f32.mrf.mxu0
  %v130 = vadd.f32 %v34, %v129
  %131 = vdwg.mxu0
  %132 = vmatpush.bf16.msra.mxu0 0
  %133 = vmatpush.bf16.msra.mxu0 0
  %134 = vmatpush.bf16.msra.mxu0 0
  %135 = vmatpush.bf16.msra.mxu0 0
  %136 = vmatpush.bf16.msra.mxu0 0
  %137 = vmatpush.bf16.msra.mxu0 0
  %138 = vmatpush.bf16.msra.mxu0 0
  %139 = vmatpush.bf16.msra.mxu0 %v55
  %140 = vmatmul.bf16.gmra.mxu0 %v63
  %v141 = vpop.f32.mrf.mxu0
  %v142 = vadd.f32 %v35, %v141
  %v143 = vpop.f32.mrf.mxu0
  %v144 = vadd.f32 %v35, %v143
  %145 = vmatmul.bf16.gmra.mxu0 %v66
  %v146 = vpop.f32.mrf.mxu0
  %v147 = vadd.f32 %v35, %v146
  %v148 = vpop.f32.mrf.mxu0
  %v149 = vadd.f32 %v35, %v148
  %150 = vmatmul.bf16.gmra.mxu0 %v69
  %v151 = vpop.f32.mrf.mxu0
  %v152 = vadd.f32 %v35, %v151
  %v153 = vpop.f32.mrf.mxu0
  %v154 = vadd.f32 %v35, %v153
  %155 = vmatmul.bf16.gmra.mxu0 %v72
  %v156 = vpop.f32.mrf.mxu0
  %v157 = vadd.f32 %v35, %v156
  %v158 = vpop.f32.mrf.mxu0
  %v159 = vadd.f32 %v35, %v158
  %160 = vdwg.mxu0
  %161 = vmatpush.bf16.msra.mxu0 0
  %162 = vmatpush.bf16.msra.mxu0 0
  %163 = vmatpush.bf16.msra.mxu0 0
  %164 = vmatpush.bf16.msra.mxu0 0
  %165 = vmatpush.bf16.msra.mxu0 0
  %166 = vmatpush.bf16.msra.mxu0 0
  %167 = vmatpush.bf16.msra.mxu0 0
  %168 = vmatpush.bf16.msra.mxu0 %v56
  %169 = vmatmul.bf16.gmra.mxu0 %v63
  %v170 = vpop.f32.mrf.mxu0
  %v171 = vadd.f32 %v36, %v170
  %v172 = vpop.f32.mrf.mxu0
  %v173 = vadd.f32 %v36, %v172
  %174 = vmatmul.bf16.gmra.mxu0 %v66
  %v175 = vpop.f32.mrf.mxu0
  %v176 = vadd.f32 %v36, %v175
  %v177 = vpop.f32.mrf.mxu0
  %v178 = vadd.f32 %v36, %v177
  %179 = vmatmul.bf16.gmra.mxu0 %v69
  %v180 = vpop.f32.mrf.mxu0
  %v181 = vadd.f32 %v36, %v180
  %v182 = vpop.f32.mrf.mxu0
  %v183 = vadd.f32 %v36, %v182
  %184 = vmatmul.bf16.gmra.mxu0 %v72
  %v185 = vpop.f32.mrf.mxu0
  %v186 = vadd.f32 %v36, %v185
  %v187 = vpop.f32.mrf.mxu0
  %v188 = vadd.f32 %v36, %v187
  %189 = vdwg.mxu0
  %190 = vst [vmem:[%s3] sm:$0xff] %v84
  %191 = vst [vmem:[%s3 + $0x8] sm:$0xff] %v113
  %192 = vst [vmem:[%s3 + $0x10] sm:$0xff] %v142
  %193 = vst [vmem:[%s3 + $0x18] sm:$0xff] %v171
  %194 = vst [vmem:[%s3 + $0x20] sm:$0xff] %v86
  %195 = vst [vmem:[%s3 + $0x28] sm:$0xff] %v115
  %196 = vst [vmem:[%s3 + $0x30] sm:$0xff] %v144
  %197 = vst [vmem:[%s3 + $0x38] sm:$0xff] %v173
  %198 = vst [vmem:[%s3 + $0x40] sm:$0xff] %v89
  %199 = vst [vmem:[%s3 + $0x48] sm:$0xff] %v118
  %200 = vst [vmem:[%s3 + $0x50] sm:$0xff] %v147
  %201 = vst [vmem:[%s3 + $0x58] sm:$0xff] %v176
  %202 = vst [vmem:[%s3 + $0x60] sm:$0xff] %v91
  %203 = vst [vmem:[%s3 + $0x68] sm:$0xff] %v120
  %204 = vst [vmem:[%s3 + $0x70] sm:$0xff] %v149
  %205 = vst [vmem:[%s3 + $0x78] sm:$0xff] %v178
  %206 = vst [vmem:[%s3 + $0x80] sm:$0xff] %v94
  %207 = vst [vmem:[%s3 + $0x88] sm:$0xff] %v123
  %208 = vst [vmem:[%s3 + $0x90] sm:$0xff] %v152
  %209 = vst [vmem:[%s3 + $0x98] sm:$0xff] %v181
  %210 = vst [vmem:[%s3 + $0xa0] sm:$0xff] %v96
  %211 = vst [vmem:[%s3 + $0xa8] sm:$0xff] %v125
  %212 = vst [vmem:[%s3 + $0xb0] sm:$0xff] %v154
  %213 = vst [vmem:[%s3 + $0xb8] sm:$0xff] %v183
  %214 = vst [vmem:[%s3 + $0xc0] sm:$0xff] %v99
  %215 = vst [vmem:[%s3 + $0xc8] sm:$0xff] %v128
  %216 = vst [vmem:[%s3 + $0xd0] sm:$0xff] %v157
  %217 = vst [vmem:[%s3 + $0xd8] sm:$0xff] %v186
  %218 = vst [vmem:[%s3 + $0xe0] sm:$0xff] %v101
  %219 = vst [vmem:[%s3 + $0xe8] sm:$0xff] %v130
  %220 = vst [vmem:[%s3 + $0xf0] sm:$0xff] %v159
  %221 = vst [vmem:[%s3 + $0xf8] sm:$0xff] %v188
  // Predicated region
  $region14: #{lstm_model_forward.5} parent=0 // pred_check
    _
  $region15: #{lstm_model_forward.5} parent=0 // pred_check_branch
    %223 = sbr.rel (0) target = $region17
  $region16: #{lstm_model_forward.5} parent=0 // pred_region
    _
  $region17: #{lstm_model_forward.5} parent=0 // pred_fallthru
    _
  // Predicated region
  $region18: #{lstm_model_forward.5} parent=0 // pred_check
    _
  $region19: #{lstm_model_forward.5} parent=0 // pred_check_branch
    %225 = sbr.rel (0) target = $region21
  $region20: #{lstm_model_forward.5} parent=0 // pred_region
    _
  $region21: #{lstm_model_forward.5} parent=0 // pred_fallthru
    _

// kernel: lstm_model_forward.9
$region0: #{lstm_model_forward.9}
  #allocation0 [shape = 'u32[]', space=smem, size = 0x4, offset = 0x4, fixed_abs, tag = 'smem constant byte address 0x4 - core index']
  #allocation1 [shape = 'u32[72,128]{1,0:T(1,128)}', space=vmem, size = 0x9000, scoped, tag = 'internal scratch']
  %s0 = inlined_call_operand.vmem [shape: f32[64,128], index: 0, kind: input, shape index: {}]
  %s1 = inlined_call_operand.vmem [shape: bf16[128,128], index: 1, kind: input, shape index: {}]
  %s2 = inlined_call_operand.vmem [shape: f32[1,128], index: 2, kind: input, shape index: {}]
  %s3 = inlined_call_operand.vmem [shape: f32[64,128], index: 3, kind: output, shape index: {}]
  %s4 = sld [smem:[#allocation0]]
  $region22: #{lstm_model_forward.9} parent=0
    _
  %s6 = ssub.s32 1, %s4
  %s7 = scalar_select 0, %s6, %s4
  // Predicated region
  $region2: #{lstm_model_forward.9} parent=0 // pred_check
    _
  $region3: #{lstm_model_forward.9} parent=0 // pred_check_branch
    %9 = sbr.rel (0) target = $region5
  $region4: #{lstm_model_forward.9} parent=0 // pred_region
    _
  $region5: #{lstm_model_forward.9} parent=0 // pred_fallthru
    _
  // Predicated region
  $region6: #{lstm_model_forward.9} parent=0 // pred_check
    _
  $region7: #{lstm_model_forward.9} parent=0 // pred_check_branch
    %11 = sbr.rel (0) target = $region9
  $region8: #{lstm_model_forward.9} parent=0 // pred_region
    _
  $region9: #{lstm_model_forward.9} parent=0 // pred_fallthru
    _
  // Predicated region
  $region10: #{lstm_model_forward.9} parent=0 // pred_check
    _
  $region11: #{lstm_model_forward.9} parent=0 // pred_check_branch
    %13 = sbr.rel (0) target = $region13
  $region12: #{lstm_model_forward.9} parent=0 // pred_region
    _
  $region13: #{lstm_model_forward.9} parent=0 // pred_fallthru
    _
  %v14 = vld [vmem:[%s0] sm:$0xff]
  %v15 = vld [vmem:[%s0 + $0x8] sm:$0xff]
  %v16 = vld [vmem:[%s0 + $0x10] sm:$0xff]
  %v17 = vld [vmem:[%s0 + $0x18] sm:$0xff]
  %v18 = vld [vmem:[%s0 + $0x20] sm:$0xff]
  %v19 = vld [vmem:[%s0 + $0x28] sm:$0xff]
  %v20 = vld [vmem:[%s0 + $0x30] sm:$0xff]
  %v21 = vld [vmem:[%s0 + $0x38] sm:$0xff]
  %v22 = vpack.c.bf16 %v15, %v14
  %v23 = vpack.c.bf16 %v17, %v16
  %v24 = vpack.c.bf16 %v19, %v18
  %v25 = vpack.c.bf16 %v21, %v20
  %v26 = vld [vmem:[%s1] sm:$0xf]
  %v27 = vld [vmem:[%s1 + $0x4] sm:$0xf]
  %v28 = vld [vmem:[%s1 + $0x8] sm:$0xf]
  %v29 = vld [vmem:[%s1 + $0xc] sm:$0xf]
  %v30 = vld [vmem:[%s1 + $0x10] sm:$0xf]
  %v31 = vld [vmem:[%s1 + $0x14] sm:$0xf]
  %v32 = vld [vmem:[%s1 + $0x18] sm:$0xf]
  %v33 = vld [vmem:[%s1 + $0x1c] sm:$0xf]
  %v34 = vld [vmem:[%s1 + $0x20] sm:$0xf]
  %v35 = vld [vmem:[%s1 + $0x24] sm:$0xf]
  %v36 = vld [vmem:[%s1 + $0x28] sm:$0xf]
  %v37 = vld [vmem:[%s1 + $0x2c] sm:$0xf]
  %v38 = vld [vmem:[%s1 + $0x30] sm:$0xf]
  %v39 = vld [vmem:[%s1 + $0x34] sm:$0xf]
  %v40 = vld [vmem:[%s1 + $0x38] sm:$0xf]
  %v41 = vld [vmem:[%s1 + $0x3c] sm:$0xf]
  %v42 = vld [vmem:[%s2] sm:$0x1]
  %v44 = vperm.slane %v42, 0
  %v62 = vunpack.c.l.b16 %v26
  %v63 = vunpack.c.l.b16 %v27
  %v64 = vunpack.c.l.b16 %v28
  %v65 = vunpack.c.l.b16 %v29
  %v66 = vunpack.c.l.b16 %v30
  %v67 = vunpack.c.l.b16 %v31
  %v68 = vunpack.c.l.b16 %v32
  %v69 = vunpack.c.l.b16 %v33
  %v70 = vunpack.c.l.b16 %v34
  %v71 = vunpack.c.l.b16 %v35
  %v72 = vunpack.c.l.b16 %v36
  %v73 = vunpack.c.l.b16 %v37
  %v74 = vunpack.c.l.b16 %v38
  %v75 = vunpack.c.l.b16 %v39
  %v76 = vunpack.c.l.b16 %v40
  %v77 = vunpack.c.l.b16 %v41
  %v78 = vpack.c.b16 %v63, %v62
  %v79 = vpack.c.b16 %v65, %v64
  %v80 = vpack.c.b16 %v67, %v66
  %v81 = vpack.c.b16 %v69, %v68
  %v82 = vpack.c.b16 %v71, %v70
  %v83 = vpack.c.b16 %v73, %v72
  %v84 = vpack.c.b16 %v75, %v74
  %v85 = vpack.c.b16 %v77, %v76
  %94 = vmatpush.bf16.msra.mxu0 %v85
  %95 = vmatpush.bf16.msra.mxu0 %v84
  %96 = vmatpush.bf16.msra.mxu0 %v83
  %97 = vmatpush.bf16.msra.mxu0 %v82
  %98 = vmatpush.bf16.msra.mxu0 %v81
  %99 = vmatpush.bf16.msra.mxu0 %v80
  %100 = vmatpush.bf16.msra.mxu0 %v79
  %101 = vmatpush.bf16.msra.mxu0 %v78
  %102 = vmatmul.bf16.gmra.mxu0 %v22
  %v103 = vpop.f32.mrf.mxu0
  %v104 = vadd.f32 %v44, %v103
  %v105 = vpop.f32.mrf.mxu0
  %v106 = vadd.f32 %v44, %v105
  %107 = vmatmul.bf16.gmra.mxu0 %v23
  %v108 = vpop.f32.mrf.mxu0
  %v109 = vadd.f32 %v44, %v108
  %v110 = vpop.f32.mrf.mxu0
  %v111 = vadd.f32 %v44, %v110
  %112 = vmatmul.bf16.gmra.mxu0 %v24
  %v113 = vpop.f32.mrf.mxu0
  %v114 = vadd.f32 %v44, %v113
  %v115 = vpop.f32.mrf.mxu0
  %v116 = vadd.f32 %v44, %v115
  %117 = vmatmul.bf16.gmra.mxu0 %v25
  %v118 = vpop.f32.mrf.mxu0
  %v119 = vadd.f32 %v44, %v118
  %v120 = vpop.f32.mrf.mxu0
  %v121 = vadd.f32 %v44, %v120
  %122 = vdwg.mxu0
  %123 = vst [vmem:[%s3] sm:$0xff] %v104
  %124 = vst [vmem:[%s3 + $0x8] sm:$0xff] %v106
  %125 = vst [vmem:[%s3 + $0x10] sm:$0xff] %v109
  %126 = vst [vmem:[%s3 + $0x18] sm:$0xff] %v111
  %127 = vst [vmem:[%s3 + $0x20] sm:$0xff] %v114
  %128 = vst [vmem:[%s3 + $0x28] sm:$0xff] %v116
  %129 = vst [vmem:[%s3 + $0x30] sm:$0xff] %v119
  %130 = vst [vmem:[%s3 + $0x38] sm:$0xff] %v121
  // Predicated region
  $region14: #{lstm_model_forward.9} parent=0 // pred_check
    _
  $region15: #{lstm_model_forward.9} parent=0 // pred_check_branch
    %132 = sbr.rel (0) target = $region17
  $region16: #{lstm_model_forward.9} parent=0 // pred_region
    _
  $region17: #{lstm_model_forward.9} parent=0 // pred_fallthru
    _
  // Predicated region
  $region18: #{lstm_model_forward.9} parent=0 // pred_check
    _
  $region19: #{lstm_model_forward.9} parent=0 // pred_check_branch
    %134 = sbr.rel (0) target = $region21
  $region20: #{lstm_model_forward.9} parent=0 // pred_region
    _
  $region21: #{lstm_model_forward.9} parent=0 // pred_fallthru
    _

// kernel: lstm_model_forward.7
$region0: #{lstm_model_forward.7}
  #allocation0 [shape = 'u32[]', space=smem, size = 0x4, offset = 0x4, fixed_abs, tag = 'smem constant byte address 0x4 - core index']
  #allocation1 [shape = 'u32[72,128]{1,0:T(1,128)}', space=vmem, size = 0x9000, scoped, tag = 'internal scratch']
  %s0 = inlined_call_operand.vmem [shape: f32[64,128], index: 0, kind: input, shape index: {}]
  %s1 = inlined_call_operand.hbm [shape: bf16[128,512], index: 1, kind: input, shape index: {}]
  %s2 = inlined_call_operand.vmem [shape: f32[1,512], index: 2, kind: input, shape index: {}]
  %s3 = inlined_call_operand.vmem [shape: f32[64,512], index: 3, kind: output, shape index: {}]
  %s4 = sld [smem:[#allocation0]]
  $region26: #{lstm_model_forward.7} parent=0
    _
  %s6 = ssub.s32 1, %s4
  %s7 = scalar_select 0, %s6, %s4
  $region1: #{lstm_model_forward.7} parent=0
    #allocation2 [shape = 'u8[131072]{0}', space=vmem, size = 0x20000, scoped, tag = 'input window, operand 1, single buffered']
    #allocation3 [shape = 's32[1]{0}', space=sflag, size = 0x4, scoped, tag = 'scoped memory for lstm_model_forward.7']
    %8 = vsyncpa [#allocation3], 0
    // Predicated region
    $region2: #{lstm_model_forward.7} parent=1 // pred_check
      _
    $region3: #{lstm_model_forward.7} parent=1 // pred_check_branch
      %10 = sbr.rel (0) target = $region5
    $region4: #{lstm_model_forward.7} parent=1 // pred_region
      _
    $region5: #{lstm_model_forward.7} parent=1 // pred_fallthru
      _
    // Predicated region
    $region6: #{lstm_model_forward.7} parent=1 // pred_check
      _
    $region7: #{lstm_model_forward.7} parent=1 // pred_check_branch
      %12 = sbr.rel (0) target = $region9
    $region8: #{lstm_model_forward.7} parent=1 // pred_region
      %14 = vsyncadd [#allocation3], 0
      %s15 = sshll.u32 %s1, 4
      %s16 = int_to_ptr.hbm [resolvable:$true] %s15
      %s17 = sshll.u32 [#allocation2], 4
      %s18 = int_to_ptr.vmem [resolvable:$true] %s17
      %23 = dma.hbm_to_vmem [thread:$0]  %s16, 4096, %s18, [#allocation3], 256, 256, 16
    $region9: #{lstm_model_forward.7} parent=1 // pred_fallthru
      _
    // Predicated region
    $region10: #{lstm_model_forward.7} parent=1 // pred_check
      _
    $region11: #{lstm_model_forward.7} parent=1 // pred_check_branch
      %25 = sbr.rel (0) target = $region13
    $region12: #{lstm_model_forward.7} parent=1 // pred_region
      _
    $region13: #{lstm_model_forward.7} parent=1 // pred_fallthru
      _
    // Predicated region
    $region14: #{lstm_model_forward.7} parent=1 // pred_check
      _
    $region15: #{lstm_model_forward.7} parent=1 // pred_check_branch
      %27 = sbr.rel (0) target = $region17
    $region16: #{lstm_model_forward.7} parent=1 // pred_region
      %29 = dma.done [#allocation3], 4096
    $region17: #{lstm_model_forward.7} parent=1 // pred_fallthru
      _
    %v30 = vld [vmem:[%s0] sm:$0xff]
    %v31 = vld [vmem:[%s0 + $0x8] sm:$0xff]
    %v32 = vld [vmem:[%s0 + $0x10] sm:$0xff]
    %v33 = vld [vmem:[%s0 + $0x18] sm:$0xff]
    %v34 = vld [vmem:[%s0 + $0x20] sm:$0xff]
    %v35 = vld [vmem:[%s0 + $0x28] sm:$0xff]
    %v36 = vld [vmem:[%s0 + $0x30] sm:$0xff]
    %v37 = vld [vmem:[%s0 + $0x38] sm:$0xff]
    %v38 = vpack.c.bf16 %v31, %v30
    %v39 = vpack.c.bf16 %v33, %v32
    %v40 = vpack.c.bf16 %v35, %v34
    %v41 = vpack.c.bf16 %v37, %v36
    %v42 = vld [vmem:[#allocation2] sm:$0xff]
    %v43 = vld [vmem:[#allocation2 + $0x8] sm:$0xff]
    %v44 = vld [vmem:[#allocation2 + $0x10] sm:$0xff]
    %v45 = vld [vmem:[#allocation2 + $0x18] sm:$0xff]
    %v46 = vld [vmem:[#allocation2 + $0x20] sm:$0xff]
    %v47 = vld [vmem:[#allocation2 + $0x28] sm:$0xff]
    %v48 = vld [vmem:[#allocation2 + $0x30] sm:$0xff]
    %v49 = vld [vmem:[#allocation2 + $0x38] sm:$0xff]
    %v50 = vld [vmem:[#allocation2 + $0x40] sm:$0xff]
    %v51 = vld [vmem:[#allocation2 + $0x48] sm:$0xff]
    %v52 = vld [vmem:[#allocation2 + $0x50] sm:$0xff]
    %v53 = vld [vmem:[#allocation2 + $0x58] sm:$0xff]
    %v54 = vld [vmem:[#allocation2 + $0x60] sm:$0xff]
    %v55 = vld [vmem:[#allocation2 + $0x68] sm:$0xff]
    %v56 = vld [vmem:[#allocation2 + $0x70] sm:$0xff]
    %v57 = vld [vmem:[#allocation2 + $0x78] sm:$0xff]
    %v58 = vld [vmem:[#allocation2 + $0x80] sm:$0xff]
    %v59 = vld [vmem:[#allocation2 + $0x88] sm:$0xff]
    %v60 = vld [vmem:[#allocation2 + $0x90] sm:$0xff]
    %v61 = vld [vmem:[#allocation2 + $0x98] sm:$0xff]
    %v62 = vld [vmem:[#allocation2 + $0xa0] sm:$0xff]
    %v63 = vld [vmem:[#allocation2 + $0xa8] sm:$0xff]
    %v64 = vld [vmem:[#allocation2 + $0xb0] sm:$0xff]
    %v65 = vld [vmem:[#allocation2 + $0xb8] sm:$0xff]
    %v66 = vld [vmem:[#allocation2 + $0xc0] sm:$0xff]
    %v67 = vld [vmem:[#allocation2 + $0xc8] sm:$0xff]
    %v68 = vld [vmem:[#allocation2 + $0xd0] sm:$0xff]
    %v69 = vld [vmem:[#allocation2 + $0xd8] sm:$0xff]
    %v70 = vld [vmem:[#allocation2 + $0xe0] sm:$0xff]
    %v71 = vld [vmem:[#allocation2 + $0xe8] sm:$0xff]
    %v72 = vld [vmem:[#allocation2 + $0xf0] sm:$0xff]
    %v73 = vld [vmem:[#allocation2 + $0xf8] sm:$0xff]
    %v74 = vld [vmem:[%s2] sm:$0xf]
    %v76 = vperm.slane %v74, 0
    %v77 = vperm.slane %v74, 1
    %v78 = vperm.slane %v74, 2
    %v79 = vperm.slane %v74, 3
    %v116 = vunpack.c.l.b16 %v42
    %v117 = vunpack.c.h.b16 %v42
    %v118 = vunpack.c.l.b16 %v43
    %v119 = vunpack.c.h.b16 %v43
    %v120 = vunpack.c.l.b16 %v44
    %v121 = vunpack.c.h.b16 %v44
    %v122 = vunpack.c.l.b16 %v45
    %v123 = vunpack.c.h.b16 %v45
    %v124 = vunpack.c.l.b16 %v46
    %v125 = vunpack.c.h.b16 %v46
    %v126 = vunpack.c.l.b16 %v47
    %v127 = vunpack.c.h.b16 %v47
    %v128 = vunpack.c.l.b16 %v48
    %v129 = vunpack.c.h.b16 %v48
    %v130 = vunpack.c.l.b16 %v49
    %v131 = vunpack.c.h.b16 %v49
    %v132 = vunpack.c.l.b16 %v50
    %v133 = vunpack.c.h.b16 %v50
    %v134 = vunpack.c.l.b16 %v51
    %v135 = vunpack.c.h.b16 %v51
    %v136 = vunpack.c.l.b16 %v52
    %v137 = vunpack.c.h.b16 %v52
    %v138 = vunpack.c.l.b16 %v53
    %v139 = vunpack.c.h.b16 %v53
    %v140 = vunpack.c.l.b16 %v54
    %v141 = vunpack.c.h.b16 %v54
    %v142 = vunpack.c.l.b16 %v55
    %v143 = vunpack.c.h.b16 %v55
    %v144 = vunpack.c.l.b16 %v56
    %v145 = vunpack.c.h.b16 %v56
    %v146 = vunpack.c.l.b16 %v57
    %v147 = vunpack.c.h.b16 %v57
    %v148 = vunpack.c.l.b16 %v58
    %v149 = vunpack.c.h.b16 %v58
    %v150 = vunpack.c.l.b16 %v59
    %v151 = vunpack.c.h.b16 %v59
    %v152 = vunpack.c.l.b16 %v60
    %v153 = vunpack.c.h.b16 %v60
    %v154 = vunpack.c.l.b16 %v61
    %v155 = vunpack.c.h.b16 %v61
    %v156 = vunpack.c.l.b16 %v62
    %v157 = vunpack.c.h.b16 %v62
    %v158 = vunpack.c.l.b16 %v63
    %v159 = vunpack.c.h.b16 %v63
    %v160 = vunpack.c.l.b16 %v64
    %v161 = vunpack.c.h.b16 %v64
    %v162 = vunpack.c.l.b16 %v65
    %v163 = vunpack.c.h.b16 %v65
    %v164 = vunpack.c.l.b16 %v66
    %v165 = vunpack.c.h.b16 %v66
    %v166 = vunpack.c.l.b16 %v67
    %v167 = vunpack.c.h.b16 %v67
    %v168 = vunpack.c.l.b16 %v68
    %v169 = vunpack.c.h.b16 %v68
    %v170 = vunpack.c.l.b16 %v69
    %v171 = vunpack.c.h.b16 %v69
    %v172 = vunpack.c.l.b16 %v70
    %v173 = vunpack.c.h.b16 %v70
    %v174 = vunpack.c.l.b16 %v71
    %v175 = vunpack.c.h.b16 %v71
    %v176 = vunpack.c.l.b16 %v72
    %v177 = vunpack.c.h.b16 %v72
    %v178 = vunpack.c.l.b16 %v73
    %v179 = vunpack.c.h.b16 %v73
    %v180 = vpack.c.b16 %v120, %v116
    %v181 = vpack.c.b16 %v121, %v117
    %v182 = vpack.c.b16 %v122, %v118
    %v183 = vpack.c.b16 %v123, %v119
    %v184 = vpack.c.b16 %v128, %v124
    %v185 = vpack.c.b16 %v129, %v125
    %v186 = vpack.c.b16 %v130, %v126
    %v187 = vpack.c.b16 %v131, %v127
    %v188 = vpack.c.b16 %v136, %v132
    %v189 = vpack.c.b16 %v137, %v133
    %v190 = vpack.c.b16 %v138, %v134
    %v191 = vpack.c.b16 %v139, %v135
    %v192 = vpack.c.b16 %v144, %v140
    %v193 = vpack.c.b16 %v145, %v141
    %v194 = vpack.c.b16 %v146, %v142
    %v195 = vpack.c.b16 %v147, %v143
    %v196 = vpack.c.b16 %v152, %v148
    %v197 = vpack.c.b16 %v153, %v149
    %v198 = vpack.c.b16 %v154, %v150
    %v199 = vpack.c.b16 %v155, %v151
    %v200 = vpack.c.b16 %v160, %v156
    %v201 = vpack.c.b16 %v161, %v157
    %v202 = vpack.c.b16 %v162, %v158
    %v203 = vpack.c.b16 %v163, %v159
    %v204 = vpack.c.b16 %v168, %v164
    %v205 = vpack.c.b16 %v169, %v165
    %v206 = vpack.c.b16 %v170, %v166
    %v207 = vpack.c.b16 %v171, %v167
    %v208 = vpack.c.b16 %v176, %v172
    %v209 = vpack.c.b16 %v177, %v173
    %v210 = vpack.c.b16 %v178, %v174
    %v211 = vpack.c.b16 %v179, %v175
    %244 = vmatpush.bf16.msra.mxu0 %v208
    %245 = vmatpush.bf16.msra.mxu0 %v204
    %246 = vmatpush.bf16.msra.mxu0 %v200
    %247 = vmatpush.bf16.msra.mxu0 %v196
    %248 = vmatpush.bf16.msra.mxu0 %v192
    %249 = vmatpush.bf16.msra.mxu0 %v188
    %250 = vmatpush.bf16.msra.mxu0 %v184
    %251 = vmatpush.bf16.msra.mxu0 %v180
    %252 = vmatmul.bf16.gmra.mxu0 %v38
    %v253 = vpop.f32.mrf.mxu0
    %v254 = vadd.f32 %v76, %v253
    %v255 = vpop.f32.mrf.mxu0
    %v256 = vadd.f32 %v76, %v255
    %257 = vmatmul.bf16.gmra.mxu0 %v39
    %v258 = vpop.f32.mrf.mxu0
    %v259 = vadd.f32 %v76, %v258
    %v260 = vpop.f32.mrf.mxu0
    %v261 = vadd.f32 %v76, %v260
    %262 = vmatmul.bf16.gmra.mxu0 %v40
    %v263 = vpop.f32.mrf.mxu0
    %v264 = vadd.f32 %v76, %v263
    %v265 = vpop.f32.mrf.mxu0
    %v266 = vadd.f32 %v76, %v265
    %267 = vmatmul.bf16.gmra.mxu0 %v41
    %v268 = vpop.f32.mrf.mxu0
    %v269 = vadd.f32 %v76, %v268
    %v270 = vpop.f32.mrf.mxu0
    %v271 = vadd.f32 %v76, %v270
    %272 = vdwg.mxu0
    %273 = vmatpush.bf16.msra.mxu0 %v209
    %274 = vmatpush.bf16.msra.mxu0 %v205
    %275 = vmatpush.bf16.msra.mxu0 %v201
    %276 = vmatpush.bf16.msra.mxu0 %v197
    %277 = vmatpush.bf16.msra.mxu0 %v193
    %278 = vmatpush.bf16.msra.mxu0 %v189
    %279 = vmatpush.bf16.msra.mxu0 %v185
    %280 = vmatpush.bf16.msra.mxu0 %v181
    %281 = vmatmul.bf16.gmra.mxu0 %v38
    %v282 = vpop.f32.mrf.mxu0
    %v283 = vadd.f32 %v77, %v282
    %v284 = vpop.f32.mrf.mxu0
    %v285 = vadd.f32 %v77, %v284
    %286 = vmatmul.bf16.gmra.mxu0 %v39
    %v287 = vpop.f32.mrf.mxu0
    %v288 = vadd.f32 %v77, %v287
    %v289 = vpop.f32.mrf.mxu0
    %v290 = vadd.f32 %v77, %v289
    %291 = vmatmul.bf16.gmra.mxu0 %v40
    %v292 = vpop.f32.mrf.mxu0
    %v293 = vadd.f32 %v77, %v292
    %v294 = vpop.f32.mrf.mxu0
    %v295 = vadd.f32 %v77, %v294
    %296 = vmatmul.bf16.gmra.mxu0 %v41
    %v297 = vpop.f32.mrf.mxu0
    %v298 = vadd.f32 %v77, %v297
    %v299 = vpop.f32.mrf.mxu0
    %v300 = vadd.f32 %v77, %v299
    %301 = vdwg.mxu0
    %302 = vmatpush.bf16.msra.mxu0 %v210
    %303 = vmatpush.bf16.msra.mxu0 %v206
    %304 = vmatpush.bf16.msra.mxu0 %v202
    %305 = vmatpush.bf16.msra.mxu0 %v198
    %306 = vmatpush.bf16.msra.mxu0 %v194
    %307 = vmatpush.bf16.msra.mxu0 %v190
    %308 = vmatpush.bf16.msra.mxu0 %v186
    %309 = vmatpush.bf16.msra.mxu0 %v182
    %310 = vmatmul.bf16.gmra.mxu0 %v38
    %v311 = vpop.f32.mrf.mxu0
    %v312 = vadd.f32 %v78, %v311
    %v313 = vpop.f32.mrf.mxu0
    %v314 = vadd.f32 %v78, %v313
    %315 = vmatmul.bf16.gmra.mxu0 %v39
    %v316 = vpop.f32.mrf.mxu0
    %v317 = vadd.f32 %v78, %v316
    %v318 = vpop.f32.mrf.mxu0
    %v319 = vadd.f32 %v78, %v318
    %320 = vmatmul.bf16.gmra.mxu0 %v40
    %v321 = vpop.f32.mrf.mxu0
    %v322 = vadd.f32 %v78, %v321
    %v323 = vpop.f32.mrf.mxu0
    %v324 = vadd.f32 %v78, %v323
    %325 = vmatmul.bf16.gmra.mxu0 %v41
    %v326 = vpop.f32.mrf.mxu0
    %v327 = vadd.f32 %v78, %v326
    %v328 = vpop.f32.mrf.mxu0
    %v329 = vadd.f32 %v78, %v328
    %330 = vdwg.mxu0
    %331 = vmatpush.bf16.msra.mxu0 %v211
    %332 = vmatpush.bf16.msra.mxu0 %v207
    %333 = vmatpush.bf16.msra.mxu0 %v203
    %334 = vmatpush.bf16.msra.mxu0 %v199
    %335 = vmatpush.bf16.msra.mxu0 %v195
    %336 = vmatpush.bf16.msra.mxu0 %v191
    %337 = vmatpush.bf16.msra.mxu0 %v187
    %338 = vmatpush.bf16.msra.mxu0 %v183
    %339 = vmatmul.bf16.gmra.mxu0 %v38
    %v340 = vpop.f32.mrf.mxu0
    %v341 = vadd.f32 %v79, %v340
    %v342 = vpop.f32.mrf.mxu0
    %v343 = vadd.f32 %v79, %v342
    %344 = vmatmul.bf16.gmra.mxu0 %v39
    %v345 = vpop.f32.mrf.mxu0
    %v346 = vadd.f32 %v79, %v345
    %v347 = vpop.f32.mrf.mxu0
    %v348 = vadd.f32 %v79, %v347
    %349 = vmatmul.bf16.gmra.mxu0 %v40
    %v350 = vpop.f32.mrf.mxu0
    %v351 = vadd.f32 %v79, %v350
    %v352 = vpop.f32.mrf.mxu0
    %v353 = vadd.f32 %v79, %v352
    %354 = vmatmul.bf16.gmra.mxu0 %v41
    %v355 = vpop.f32.mrf.mxu0
    %v356 = vadd.f32 %v79, %v355
    %v357 = vpop.f32.mrf.mxu0
    %v358 = vadd.f32 %v79, %v357
    %359 = vdwg.mxu0
    %360 = vst [vmem:[%s3] sm:$0xff] %v254
    %361 = vst [vmem:[%s3 + $0x8] sm:$0xff] %v283
    %362 = vst [vmem:[%s3 + $0x10] sm:$0xff] %v312
    %363 = vst [vmem:[%s3 + $0x18] sm:$0xff] %v341
    %364 = vst [vmem:[%s3 + $0x20] sm:$0xff] %v256
    %365 = vst [vmem:[%s3 + $0x28] sm:$0xff] %v285
    %366 = vst [vmem:[%s3 + $0x30] sm:$0xff] %v314
    %367 = vst [vmem:[%s3 + $0x38] sm:$0xff] %v343
    %368 = vst [vmem:[%s3 + $0x40] sm:$0xff] %v259
    %369 = vst [vmem:[%s3 + $0x48] sm:$0xff] %v288
    %370 = vst [vmem:[%s3 + $0x50] sm:$0xff] %v317
    %371 = vst [vmem:[%s3 + $0x58] sm:$0xff] %v346
    %372 = vst [vmem:[%s3 + $0x60] sm:$0xff] %v261
    %373 = vst [vmem:[%s3 + $0x68] sm:$0xff] %v290
    %374 = vst [vmem:[%s3 + $0x70] sm:$0xff] %v319
    %375 = vst [vmem:[%s3 + $0x78] sm:$0xff] %v348
    %376 = vst [vmem:[%s3 + $0x80] sm:$0xff] %v264
    %377 = vst [vmem:[%s3 + $0x88] sm:$0xff] %v293
    %378 = vst [vmem:[%s3 + $0x90] sm:$0xff] %v322
    %379 = vst [vmem:[%s3 + $0x98] sm:$0xff] %v351
    %380 = vst [vmem:[%s3 + $0xa0] sm:$0xff] %v266
    %381 = vst [vmem:[%s3 + $0xa8] sm:$0xff] %v295
    %382 = vst [vmem:[%s3 + $0xb0] sm:$0xff] %v324
    %383 = vst [vmem:[%s3 + $0xb8] sm:$0xff] %v353
    %384 = vst [vmem:[%s3 + $0xc0] sm:$0xff] %v269
    %385 = vst [vmem:[%s3 + $0xc8] sm:$0xff] %v298
    %386 = vst [vmem:[%s3 + $0xd0] sm:$0xff] %v327
    %387 = vst [vmem:[%s3 + $0xd8] sm:$0xff] %v356
    %388 = vst [vmem:[%s3 + $0xe0] sm:$0xff] %v271
    %389 = vst [vmem:[%s3 + $0xe8] sm:$0xff] %v300
    %390 = vst [vmem:[%s3 + $0xf0] sm:$0xff] %v329
    %391 = vst [vmem:[%s3 + $0xf8] sm:$0xff] %v358
    // Predicated region
    $region18: #{lstm_model_forward.7} parent=1 // pred_check
      _
    $region19: #{lstm_model_forward.7} parent=1 // pred_check_branch
      %393 = sbr.rel (0) target = $region21
    $region20: #{lstm_model_forward.7} parent=1 // pred_region
      _
    $region21: #{lstm_model_forward.7} parent=1 // pred_fallthru
      _
    // Predicated region
    $region22: #{lstm_model_forward.7} parent=1 // pred_check
      _
    $region23: #{lstm_model_forward.7} parent=1 // pred_check_branch
      %395 = sbr.rel (0) target = $region25
    $region24: #{lstm_model_forward.7} parent=1 // pred_region
      _
    $region25: #{lstm_model_forward.7} parent=1 // pred_fallthru
      _
    %396 = vsyncpa [#allocation3], 1

// kernel: lstm_model_forward.6
$region0: #{lstm_model_forward.6}
  #allocation0 [shape = 'u32[]', space=smem, size = 0x4, offset = 0x4, fixed_abs, tag = 'smem constant byte address 0x4 - core index']
  #allocation1 [shape = 'u32[72,128]{1,0:T(1,128)}', space=vmem, size = 0x9000, scoped, tag = 'internal scratch']
  #allocation2 [shape = 'f32[8,128]{1,0:T(8,128)}', space=vmem, size = 0x1000, scoped, tag = 'scratch operand']
  #allocation3 [shape = 'f32[8,128]{1,0:T(8,128)}', space=vmem, size = 0x1000, scoped, tag = 'scratch operand']
  %s0 = inlined_call_operand.vmem [shape: f32[8,8,512], index: 0, kind: input, shape index: {}]
  %s1 = inlined_call_operand.hbm [shape: bf16[128,512], index: 1, kind: input, shape index: {}]
  %s2 = inlined_call_operand.vmem [shape: f32[8,8,128], index: 2, kind: output, shape index: {}]
  %s3 = sld [smem:[#allocation0]]
  $region26: #{lstm_model_forward.6} parent=0
    _
  %s5 = ssub.s32 1, %s3
  %s6 = scalar_select 0, %s5, %s3
  $region1: #{lstm_model_forward.6} parent=0
    #allocation4 [shape = 'u8[131072]{0}', space=vmem, size = 0x20000, scoped, tag = 'input window, operand 1, single buffered']
    #allocation5 [shape = 's32[1]{0}', space=sflag, size = 0x4, scoped, tag = 'scoped memory for lstm_model_forward.6']
    %7 = vsyncpa [#allocation5], 0
    // Predicated region
    $region2: #{lstm_model_forward.6} parent=1 // pred_check
      _
    $region3: #{lstm_model_forward.6} parent=1 // pred_check_branch
      %9 = sbr.rel (0) target = $region5
    $region4: #{lstm_model_forward.6} parent=1 // pred_region
      _
    $region5: #{lstm_model_forward.6} parent=1 // pred_fallthru
      _
    // Predicated region
    $region6: #{lstm_model_forward.6} parent=1 // pred_check
      _
    $region7: #{lstm_model_forward.6} parent=1 // pred_check_branch
      %11 = sbr.rel (0) target = $region9
    $region8: #{lstm_model_forward.6} parent=1 // pred_region
      %13 = vsyncadd [#allocation5], 0
      %s14 = sshll.u32 %s1, 4
      %s15 = int_to_ptr.hbm [resolvable:$true] %s14
      %s16 = sshll.u32 [#allocation4], 4
      %s17 = int_to_ptr.vmem [resolvable:$true] %s16
      %22 = dma.hbm_to_vmem [thread:$0]  %s15, 4096, %s17, [#allocation5], 256, 256, 16
    $region9: #{lstm_model_forward.6} parent=1 // pred_fallthru
      _
    // Predicated region
    $region10: #{lstm_model_forward.6} parent=1 // pred_check
      _
    $region11: #{lstm_model_forward.6} parent=1 // pred_check_branch
      %24 = sbr.rel (0) target = $region13
    $region12: #{lstm_model_forward.6} parent=1 // pred_region
      %26 = dma.done [#allocation5], 4096
    $region13: #{lstm_model_forward.6} parent=1 // pred_fallthru
      _
    %p27 = scmp.eq.s32.totalorder 0, 0
    // Predicated region
    $region14: #{lstm_model_forward.6} parent=1 // pred_check
      %p28 = pneg %p27
    $region15: #{lstm_model_forward.6} parent=1 // pred_check_branch
      %30 = sbr.rel (%p28) target = $region17
    $region16: #{lstm_model_forward.6} parent=1 // pred_region
      %31 = vst [vmem:[#allocation2] sm:$0xff] 0.0
      %32 = vst [vmem:[#allocation3] sm:$0xff] 0.0
    $region17: #{lstm_model_forward.6} parent=1 // pred_fallthru
      _
    %v33 = vld [vmem:[#allocation4] sm:$0xff]
    %v34 = vld [vmem:[#allocation4 + $0x8] sm:$0xff]
    %v35 = vld [vmem:[#allocation4 + $0x10] sm:$0xff]
    %v36 = vld [vmem:[#allocation4 + $0x18] sm:$0xff]
    %v37 = vld [vmem:[#allocation4 + $0x20] sm:$0xff]
    %v38 = vld [vmem:[#allocation4 + $0x28] sm:$0xff]
    %v39 = vld [vmem:[#allocation4 + $0x30] sm:$0xff]
    %v40 = vld [vmem:[#allocation4 + $0x38] sm:$0xff]
    %v41 = vld [vmem:[#allocation4 + $0x40] sm:$0xff]
    %v42 = vld [vmem:[#allocation4 + $0x48] sm:$0xff]
    %v43 = vld [vmem:[#allocation4 + $0x50] sm:$0xff]
    %v44 = vld [vmem:[#allocation4 + $0x58] sm:$0xff]
    %v45 = vld [vmem:[#allocation4 + $0x60] sm:$0xff]
    %v46 = vld [vmem:[#allocation4 + $0x68] sm:$0xff]
    %v47 = vld [vmem:[#allocation4 + $0x70] sm:$0xff]
    %v48 = vld [vmem:[#allocation4 + $0x78] sm:$0xff]
    %v49 = vld [vmem:[#allocation4 + $0x80] sm:$0xff]
    %v50 = vld [vmem:[#allocation4 + $0x88] sm:$0xff]
    %v51 = vld [vmem:[#allocation4 + $0x90] sm:$0xff]
    %v52 = vld [vmem:[#allocation4 + $0x98] sm:$0xff]
    %v53 = vld [vmem:[#allocation4 + $0xa0] sm:$0xff]
    %v54 = vld [vmem:[#allocation4 + $0xa8] sm:$0xff]
    %v55 = vld [vmem:[#allocation4 + $0xb0] sm:$0xff]
    %v56 = vld [vmem:[#allocation4 + $0xb8] sm:$0xff]
    %v57 = vld [vmem:[#allocation4 + $0xc0] sm:$0xff]
    %v58 = vld [vmem:[#allocation4 + $0xc8] sm:$0xff]
    %v59 = vld [vmem:[#allocation4 + $0xd0] sm:$0xff]
    %v60 = vld [vmem:[#allocation4 + $0xd8] sm:$0xff]
    %v61 = vld [vmem:[#allocation4 + $0xe0] sm:$0xff]
    %v62 = vld [vmem:[#allocation4 + $0xe8] sm:$0xff]
    %v63 = vld [vmem:[#allocation4 + $0xf0] sm:$0xff]
    %v64 = vld [vmem:[#allocation4 + $0xf8] sm:$0xff]
    %v65 = vld [vmem:[#allocation2] sm:$0xff]
    %v66 = vld [vmem:[#allocation3] sm:$0xff]
    %v67 = vld [vmem:[%s0] sm:$0xff]
    %v68 = vld [vmem:[%s0 + $0x8] sm:$0xff]
    %v69 = vld [vmem:[%s0 + $0x10] sm:$0xff]
    %v70 = vld [vmem:[%s0 + $0x18] sm:$0xff]
    %v71 = vpack.c.bf16 %v65, %v65
    %v104 = vunpack.c.l.b16 %v33
    %v105 = vunpack.c.h.b16 %v33
    %v106 = vunpack.c.l.b16 %v34
    %v107 = vunpack.c.h.b16 %v34
    %v108 = vunpack.c.l.b16 %v35
    %v109 = vunpack.c.h.b16 %v35
    %v110 = vunpack.c.l.b16 %v36
    %v111 = vunpack.c.h.b16 %v36
    %v112 = vunpack.c.l.b16 %v37
    %v113 = vunpack.c.h.b16 %v37
    %v114 = vunpack.c.l.b16 %v38
    %v115 = vunpack.c.h.b16 %v38
    %v116 = vunpack.c.l.b16 %v39
    %v117 = vunpack.c.h.b16 %v39
    %v118 = vunpack.c.l.b16 %v40
    %v119 = vunpack.c.h.b16 %v40
    %v120 = vunpack.c.l.b16 %v41
    %v121 = vunpack.c.h.b16 %v41
    %v122 = vunpack.c.l.b16 %v42
    %v123 = vunpack.c.h.b16 %v42
    %v124 = vunpack.c.l.b16 %v43
    %v125 = vunpack.c.h.b16 %v43
    %v126 = vunpack.c.l.b16 %v44
    %v127 = vunpack.c.h.b16 %v44
    %v128 = vunpack.c.l.b16 %v45
    %v129 = vunpack.c.h.b16 %v45
    %v130 = vunpack.c.l.b16 %v46
    %v131 = vunpack.c.h.b16 %v46
    %v132 = vunpack.c.l.b16 %v47
    %v133 = vunpack.c.h.b16 %v47
    %v134 = vunpack.c.l.b16 %v48
    %v135 = vunpack.c.h.b16 %v48
    %v136 = vunpack.c.l.b16 %v49
    %v137 = vunpack.c.h.b16 %v49
    %v138 = vunpack.c.l.b16 %v50
    %v139 = vunpack.c.h.b16 %v50
    %v140 = vunpack.c.l.b16 %v51
    %v141 = vunpack.c.h.b16 %v51
    %v142 = vunpack.c.l.b16 %v52
    %v143 = vunpack.c.h.b16 %v52
    %v144 = vunpack.c.l.b16 %v53
    %v145 = vunpack.c.h.b16 %v53
    %v146 = vunpack.c.l.b16 %v54
    %v147 = vunpack.c.h.b16 %v54
    %v148 = vunpack.c.l.b16 %v55
    %v149 = vunpack.c.h.b16 %v55
    %v150 = vunpack.c.l.b16 %v56
    %v151 = vunpack.c.h.b16 %v56
    %v152 = vunpack.c.l.b16 %v57
    %v153 = vunpack.c.h.b16 %v57
    %v154 = vunpack.c.l.b16 %v58
    %v155 = vunpack.c.h.b16 %v58
    %v156 = vunpack.c.l.b16 %v59
    %v157 = vunpack.c.h.b16 %v59
    %v158 = vunpack.c.l.b16 %v60
    %v159 = vunpack.c.h.b16 %v60
    %v160 = vunpack.c.l.b16 %v61
    %v161 = vunpack.c.h.b16 %v61
    %v162 = vunpack.c.l.b16 %v62
    %v163 = vunpack.c.h.b16 %v62
    %v164 = vunpack.c.l.b16 %v63
    %v165 = vunpack.c.h.b16 %v63
    %v166 = vunpack.c.l.b16 %v64
    %v167 = vunpack.c.h.b16 %v64
    %v168 = vpack.c.b16 %v108, %v104
    %v169 = vpack.c.b16 %v109, %v105
    %v170 = vpack.c.b16 %v110, %v106
    %v171 = vpack.c.b16 %v111, %v107
    %v172 = vpack.c.b16 %v116, %v112
    %v173 = vpack.c.b16 %v117, %v113
    %v174 = vpack.c.b16 %v118, %v114
    %v175 = vpack.c.b16 %v119, %v115
    %v176 = vpack.c.b16 %v124, %v120
    %v177 = vpack.c.b16 %v125, %v121
    %v178 = vpack.c.b16 %v126, %v122
    %v179 = vpack.c.b16 %v127, %v123
    %v180 = vpack.c.b16 %v132, %v128
    %v181 = vpack.c.b16 %v133, %v129
    %v182 = vpack.c.b16 %v134, %v130
    %v183 = vpack.c.b16 %v135, %v131
    %v184 = vpack.c.b16 %v140, %v136
    %v185 = vpack.c.b16 %v141, %v137
    %v186 = vpack.c.b16 %v142, %v138
    %v187 = vpack.c.b16 %v143, %v139
    %v188 = vpack.c.b16 %v148, %v144
    %v189 = vpack.c.b16 %v149, %v145
    %v190 = vpack.c.b16 %v150, %v146
    %v191 = vpack.c.b16 %v151, %v147
    %v192 = vpack.c.b16 %v156, %v152
    %v193 = vpack.c.b16 %v157, %v153
    %v194 = vpack.c.b16 %v158, %v154
    %v195 = vpack.c.b16 %v159, %v155
    %v196 = vpack.c.b16 %v164, %v160
    %v197 = vpack.c.b16 %v165, %v161
    %v198 = vpack.c.b16 %v166, %v162
    %v199 = vpack.c.b16 %v167, %v163
    %232 = vmatpush.bf16.msra.mxu0 %v196
    %233 = vmatpush.bf16.msra.mxu0 %v192
    %234 = vmatpush.bf16.msra.mxu0 %v188
    %235 = vmatpush.bf16.msra.mxu0 %v184
    %236 = vmatpush.bf16.msra.mxu0 %v180
    %237 = vmatpush.bf16.msra.mxu0 %v176
    %238 = vmatpush.bf16.msra.mxu0 %v172
    %239 = vmatpush.bf16.msra.mxu0 %v168
    %240 = vmatmul.bf16.gmra.mxu0 %v71
    %v241 = vpop.f32.mrf.mxu0
    %v242 = vadd.f32 0.0, %v241
    %v243 = vpop.f32.mrf.mxu0
    %244 = vdwg.mxu0
    %245 = vmatpush.bf16.msra.mxu0 %v197
    %246 = vmatpush.bf16.msra.mxu0 %v193
    %247 = vmatpush.bf16.msra.mxu0 %v189
    %248 = vmatpush.bf16.msra.mxu0 %v185
    %249 = vmatpush.bf16.msra.mxu0 %v181
    %250 = vmatpush.bf16.msra.mxu0 %v177
    %251 = vmatpush.bf16.msra.mxu0 %v173
    %252 = vmatpush.bf16.msra.mxu0 %v169
    %253 = vmatmul.bf16.gmra.mxu0 %v71
    %v254 = vpop.f32.mrf.mxu0
    %v255 = vadd.f32 0.0, %v254
    %v256 = vpop.f32.mrf.mxu0
    %257 = vdwg.mxu0
    %258 = vmatpush.bf16.msra.mxu0 %v198
    %259 = vmatpush.bf16.msra.mxu0 %v194
    %260 = vmatpush.bf16.msra.mxu0 %v190
    %261 = vmatpush.bf16.msra.mxu0 %v186
    %262 = vmatpush.bf16.msra.mxu0 %v182
    %263 = vmatpush.bf16.msra.mxu0 %v178
    %264 = vmatpush.bf16.msra.mxu0 %v174
    %265 = vmatpush.bf16.msra.mxu0 %v170
    %266 = vmatmul.bf16.gmra.mxu0 %v71
    %v267 = vpop.f32.mrf.mxu0
    %v268 = vadd.f32 0.0, %v267
    %v269 = vpop.f32.mrf.mxu0
    %270 = vdwg.mxu0
    %271 = vmatpush.bf16.msra.mxu0 %v199
    %272 = vmatpush.bf16.msra.mxu0 %v195
    %273 = vmatpush.bf16.msra.mxu0 %v191
    %274 = vmatpush.bf16.msra.mxu0 %v187
    %275 = vmatpush.bf16.msra.mxu0 %v183
    %276 = vmatpush.bf16.msra.mxu0 %v179
    %277 = vmatpush.bf16.msra.mxu0 %v175
    %278 = vmatpush.bf16.msra.mxu0 %v171
    %279 = vmatmul.bf16.gmra.mxu0 %v71
    %v280 = vpop.f32.mrf.mxu0
    %v281 = vadd.f32 0.0, %v280
    %v282 = vpop.f32.mrf.mxu0
    %283 = vdwg.mxu0
    %v284 = vadd.f32 %v67, %v242
    %v285 = vadd.f32 %v68, %v255
    %v286 = vadd.f32 %v69, %v268
    %v287 = vadd.f32 %v70, %v281
    %v288 = vxor.u32 %v284, 2147483648
    %v289 = vmul.f32 %v288, 1.442695
    %v290 = vpow.pop %v289
    %v291 = vadd.f32 %v290, 1.0
    %v292 = vrcp.pop %v291
    %v293 = vmul.f32 %v291, %v292
    %v294 = vsub.f32 1.0, %v293
    %v295 = vmul.f32 %v292, %v294
    %v296 = vadd.f32 %v292, %v295
    %vm297 = vweird.f32 %v291
    %vm298 = vweird.f32 %v292
    %vm299 = vmor %vm297, %vm298
    %v300 = vsel %vm299, %v292, %v296
    %v301 = vand.u32 2147483647, %v291
    %vm302 = vcmp.eq.f32.partialorder %v301, 8.507059e+37
    %v303 = vand.u32 %v291, 2147483648
    %v304 = vor.u32 1.1754944e-38, %v303
    %v305 = vsel %vm302, %v304, %v300
    %v306 = vmul.f32 1.0, %v305
    %v307 = vxor.u32 %v285, 2147483648
    %v308 = vmul.f32 %v307, 1.442695
    %v309 = vpow.pop %v308
    %v310 = vadd.f32 %v309, 1.0
    %v311 = vrcp.pop %v310
    %v312 = vmul.f32 %v310, %v311
    %v313 = vsub.f32 1.0, %v312
    %v314 = vmul.f32 %v311, %v313
    %v315 = vadd.f32 %v311, %v314
    %vm316 = vweird.f32 %v310
    %vm317 = vweird.f32 %v311
    %vm318 = vmor %vm316, %vm317
    %v319 = vsel %vm318, %v311, %v315
    %v320 = vand.u32 2147483647, %v310
    %vm321 = vcmp.eq.f32.partialorder %v320, 8.507059e+37
    %v322 = vand.u32 %v310, 2147483648
    %v323 = vor.u32 1.1754944e-38, %v322
    %v324 = vsel %vm321, %v323, %v319
    %v325 = vmul.f32 1.0, %v324
    %v326 = vtanh.pop %v286
    %v327 = vxor.u32 %v287, 2147483648
    %v328 = vmul.f32 %v327, 1.442695
    %v329 = vpow.pop %v328
    %v330 = vadd.f32 %v329, 1.0
    %v331 = vrcp.pop %v330
    %v332 = vmul.f32 %v330, %v331
    %v333 = vsub.f32 1.0, %v332
    %v334 = vmul.f32 %v331, %v333
    %v335 = vadd.f32 %v331, %v334
    %vm336 = vweird.f32 %v330
    %vm337 = vweird.f32 %v331
    %vm338 = vmor %vm336, %vm337
    %v339 = vsel %vm338, %v331, %v335
    %v340 = vand.u32 2147483647, %v330
    %vm341 = vcmp.eq.f32.partialorder %v340, 8.507059e+37
    %v342 = vand.u32 %v330, 2147483648
    %v343 = vor.u32 1.1754944e-38, %v342
    %v344 = vsel %vm341, %v343, %v339
    %v345 = vmul.f32 1.0, %v344
    %v346 = vmul.f32 %v325, %v66
    %v347 = vmul.f32 %v306, %v326
    %v348 = vadd.f32 %v346, %v347
    %v349 = vtanh.pop %v348
    %v350 = vmul.f32 %v345, %v349
    %351 = vst [vmem:[#allocation3] sm:$0xff] %v348
    %352 = vst [vmem:[#allocation2] sm:$0xff] %v350
    %353 = vst [vmem:[%s2] sm:$0xff] %v350
    %v354 = vld [vmem:[#allocation2] sm:$0xff]
    %v355 = vld [vmem:[#allocation3] sm:$0xff]
    %s356 = scalar_lea.vmem %s0, 32
    %v357 = vld [vmem:[%s356] sm:$0xff]
    %v358 = vld [vmem:[%s356 + $0x8] sm:$0xff]
    %v359 = vld [vmem:[%s356 + $0x10] sm:$0xff]
    %v360 = vld [vmem:[%s356 + $0x18] sm:$0xff]
    %v361 = vpack.c.bf16 %v354, %v354
    %362 = vmatpush.bf16.msra.mxu0 %v196
    %363 = vmatpush.bf16.msra.mxu0 %v192
    %364 = vmatpush.bf16.msra.mxu0 %v188
    %365 = vmatpush.bf16.msra.mxu0 %v184
    %366 = vmatpush.bf16.msra.mxu0 %v180
    %367 = vmatpush.bf16.msra.mxu0 %v176
    %368 = vmatpush.bf16.msra.mxu0 %v172
    %369 = vmatpush.bf16.msra.mxu0 %v168
    %370 = vmatmul.bf16.gmra.mxu0 %v361
    %v371 = vpop.f32.mrf.mxu0
    %v372 = vadd.f32 0.0, %v371
    %v373 = vpop.f32.mrf.mxu0
    %374 = vdwg.mxu0
    %375 = vmatpush.bf16.msra.mxu0 %v197
    %376 = vmatpush.bf16.msra.mxu0 %v193
    %377 = vmatpush.bf16.msra.mxu0 %v189
    %378 = vmatpush.bf16.msra.mxu0 %v185
    %379 = vmatpush.bf16.msra.mxu0 %v181
    %380 = vmatpush.bf16.msra.mxu0 %v177
    %381 = vmatpush.bf16.msra.mxu0 %v173
    %382 = vmatpush.bf16.msra.mxu0 %v169
    %383 = vmatmul.bf16.gmra.mxu0 %v361
    %v384 = vpop.f32.mrf.mxu0
    %v385 = vadd.f32 0.0, %v384
    %v386 = vpop.f32.mrf.mxu0
    %387 = vdwg.mxu0
    %388 = vmatpush.bf16.msra.mxu0 %v198
    %389 = vmatpush.bf16.msra.mxu0 %v194
    %390 = vmatpush.bf16.msra.mxu0 %v190
    %391 = vmatpush.bf16.msra.mxu0 %v186
    %392 = vmatpush.bf16.msra.mxu0 %v182
    %393 = vmatpush.bf16.msra.mxu0 %v178
    %394 = vmatpush.bf16.msra.mxu0 %v174
    %395 = vmatpush.bf16.msra.mxu0 %v170
    %396 = vmatmul.bf16.gmra.mxu0 %v361
    %v397 = vpop.f32.mrf.mxu0
    %v398 = vadd.f32 0.0, %v397
    %v399 = vpop.f32.mrf.mxu0
    %400 = vdwg.mxu0
    %401 = vmatpush.bf16.msra.mxu0 %v199
    %402 = vmatpush.bf16.msra.mxu0 %v195
    %403 = vmatpush.bf16.msra.mxu0 %v191
    %404 = vmatpush.bf16.msra.mxu0 %v187
    %405 = vmatpush.bf16.msra.mxu0 %v183
    %406 = vmatpush.bf16.msra.mxu0 %v179
    %407 = vmatpush.bf16.msra.mxu0 %v175
    %408 = vmatpush.bf16.msra.mxu0 %v171
    %409 = vmatmul.bf16.gmra.mxu0 %v361
    %v410 = vpop.f32.mrf.mxu0
    %v411 = vadd.f32 0.0, %v410
    %v412 = vpop.f32.mrf.mxu0
    %413 = vdwg.mxu0
    %v414 = vadd.f32 %v357, %v372
    %v415 = vadd.f32 %v358, %v385
    %v416 = vadd.f32 %v359, %v398
    %v417 = vadd.f32 %v360, %v411
    %v418 = vxor.u32 %v414, 2147483648
    %v419 = vmul.f32 %v418, 1.442695
    %v420 = vpow.pop %v419
    %v421 = vadd.f32 %v420, 1.0
    %v422 = vrcp.pop %v421
    %v423 = vmul.f32 %v421, %v422
    %v424 = vsub.f32 1.0, %v423
    %v425 = vmul.f32 %v422, %v424
    %v426 = vadd.f32 %v422, %v425
    %vm427 = vweird.f32 %v421
    %vm428 = vweird.f32 %v422
    %vm429 = vmor %vm427, %vm428
    %v430 = vsel %vm429, %v422, %v426
    %v431 = vand.u32 2147483647, %v421
    %vm432 = vcmp.eq.f32.partialorder %v431, 8.507059e+37
    %v433 = vand.u32 %v421, 2147483648
    %v434 = vor.u32 1.1754944e-38, %v433
    %v435 = vsel %vm432, %v434, %v430
    %v436 = vmul.f32 1.0, %v435
    %v437 = vxor.u32 %v415, 2147483648
    %v438 = vmul.f32 %v437, 1.442695
    %v439 = vpow.pop %v438
    %v440 = vadd.f32 %v439, 1.0
    %v441 = vrcp.pop %v440
    %v442 = vmul.f32 %v440, %v441
    %v443 = vsub.f32 1.0, %v442
    %v444 = vmul.f32 %v441, %v443
    %v445 = vadd.f32 %v441, %v444
    %vm446 = vweird.f32 %v440
    %vm447 = vweird.f32 %v441
    %vm448 = vmor %vm446, %vm447
    %v449 = vsel %vm448, %v441, %v445
    %v450 = vand.u32 2147483647, %v440
    %vm451 = vcmp.eq.f32.partialorder %v450, 8.507059e+37
    %v452 = vand.u32 %v440, 2147483648
    %v453 = vor.u32 1.1754944e-38, %v452
    %v454 = vsel %vm451, %v453, %v449
    %v455 = vmul.f32 1.0, %v454
    %v456 = vtanh.pop %v416
    %v457 = vxor.u32 %v417, 2147483648
    %v458 = vmul.f32 %v457, 1.442695
    %v459 = vpow.pop %v458
    %v460 = vadd.f32 %v459, 1.0
    %v461 = vrcp.pop %v460
    %v462 = vmul.f32 %v460, %v461
    %v463 = vsub.f32 1.0, %v462
    %v464 = vmul.f32 %v461, %v463
    %v465 = vadd.f32 %v461, %v464
    %vm466 = vweird.f32 %v460
    %vm467 = vweird.f32 %v461
    %vm468 = vmor %vm466, %vm467
    %v469 = vsel %vm468, %v461, %v465
    %v470 = vand.u32 2147483647, %v460
    %vm471 = vcmp.eq.f32.partialorder %v470, 8.507059e+37
    %v472 = vand.u32 %v460, 2147483648
    %v473 = vor.u32 1.1754944e-38, %v472
    %v474 = vsel %vm471, %v473, %v469
    %v475 = vmul.f32 1.0, %v474
    %v476 = vmul.f32 %v455, %v355
    %v477 = vmul.f32 %v436, %v456
    %v478 = vadd.f32 %v476, %v477
    %v479 = vtanh.pop %v478
    %v480 = vmul.f32 %v475, %v479
    %481 = vst [vmem:[#allocation3] sm:$0xff] %v478
    %482 = vst [vmem:[#allocation2] sm:$0xff] %v480
    %s483 = scalar_lea.vmem %s2, 8
    %484 = vst [vmem:[%s483] sm:$0xff] %v480
    %v485 = vld [vmem:[#allocation2] sm:$0xff]
    %v486 = vld [vmem:[#allocation3] sm:$0xff]
    %s487 = scalar_lea.vmem %s0, 64
    %v488 = vld [vmem:[%s487] sm:$0xff]
    %v489 = vld [vmem:[%s487 + $0x8] sm:$0xff]
    %v490 = vld [vmem:[%s487 + $0x10] sm:$0xff]
    %v491 = vld [vmem:[%s487 + $0x18] sm:$0xff]
    %v492 = vpack.c.bf16 %v485, %v485
    %493 = vmatpush.bf16.msra.mxu0 %v196
    %494 = vmatpush.bf16.msra.mxu0 %v192
    %495 = vmatpush.bf16.msra.mxu0 %v188
    %496 = vmatpush.bf16.msra.mxu0 %v184
    %497 = vmatpush.bf16.msra.mxu0 %v180
    %498 = vmatpush.bf16.msra.mxu0 %v176
    %499 = vmatpush.bf16.msra.mxu0 %v172
    %500 = vmatpush.bf16.msra.mxu0 %v168
    %501 = vmatmul.bf16.gmra.mxu0 %v492
    %v502 = vpop.f32.mrf.mxu0
    %v503 = vadd.f32 0.0, %v502
    %v504 = vpop.f32.mrf.mxu0
    %505 = vdwg.mxu0
    %506 = vmatpush.bf16.msra.mxu0 %v197
    %507 = vmatpush.bf16.msra.mxu0 %v193
    %508 = vmatpush.bf16.msra.mxu0 %v189
    %509 = vmatpush.bf16.msra.mxu0 %v185
    %510 = vmatpush.bf16.msra.mxu0 %v181
    %511 = vmatpush.bf16.msra.mxu0 %v177
    %512 = vmatpush.bf16.msra.mxu0 %v173
    %513 = vmatpush.bf16.msra.mxu0 %v169
    %514 = vmatmul.bf16.gmra.mxu0 %v492
    %v515 = vpop.f32.mrf.mxu0
    %v516 = vadd.f32 0.0, %v515
    %v517 = vpop.f32.mrf.mxu0
    %518 = vdwg.mxu0
    %519 = vmatpush.bf16.msra.mxu0 %v198
    %520 = vmatpush.bf16.msra.mxu0 %v194
    %521 = vmatpush.bf16.msra.mxu0 %v190
    %522 = vmatpush.bf16.msra.mxu0 %v186
    %523 = vmatpush.bf16.msra.mxu0 %v182
    %524 = vmatpush.bf16.msra.mxu0 %v178
    %525 = vmatpush.bf16.msra.mxu0 %v174
    %526 = vmatpush.bf16.msra.mxu0 %v170
    %527 = vmatmul.bf16.gmra.mxu0 %v492
    %v528 = vpop.f32.mrf.mxu0
    %v529 = vadd.f32 0.0, %v528
    %v530 = vpop.f32.mrf.mxu0
    %531 = vdwg.mxu0
    %532 = vmatpush.bf16.msra.mxu0 %v199
    %533 = vmatpush.bf16.msra.mxu0 %v195
    %534 = vmatpush.bf16.msra.mxu0 %v191
    %535 = vmatpush.bf16.msra.mxu0 %v187
    %536 = vmatpush.bf16.msra.mxu0 %v183
    %537 = vmatpush.bf16.msra.mxu0 %v179
    %538 = vmatpush.bf16.msra.mxu0 %v175
    %539 = vmatpush.bf16.msra.mxu0 %v171
    %540 = vmatmul.bf16.gmra.mxu0 %v492
    %v541 = vpop.f32.mrf.mxu0
    %v542 = vadd.f32 0.0, %v541
    %v543 = vpop.f32.mrf.mxu0
    %544 = vdwg.mxu0
    %v545 = vadd.f32 %v488, %v503
    %v546 = vadd.f32 %v489, %v516
    %v547 = vadd.f32 %v490, %v529
    %v548 = vadd.f32 %v491, %v542
    %v549 = vxor.u32 %v545, 2147483648
    %v550 = vmul.f32 %v549, 1.442695
    %v551 = vpow.pop %v550
    %v552 = vadd.f32 %v551, 1.0
    %v553 = vrcp.pop %v552
    %v554 = vmul.f32 %v552, %v553
    %v555 = vsub.f32 1.0, %v554
    %v556 = vmul.f32 %v553, %v555
    %v557 = vadd.f32 %v553, %v556
    %vm558 = vweird.f32 %v552
    %vm559 = vweird.f32 %v553
    %vm560 = vmor %vm558, %vm559
    %v561 = vsel %vm560, %v553, %v557
    %v562 = vand.u32 2147483647, %v552
    %vm563 = vcmp.eq.f32.partialorder %v562, 8.507059e+37
    %v564 = vand.u32 %v552, 2147483648
    %v565 = vor.u32 1.1754944e-38, %v564
    %v566 = vsel %vm563, %v565, %v561
    %v567 = vmul.f32 1.0, %v566
    %v568 = vxor.u32 %v546, 2147483648
    %v569 = vmul.f32 %v568, 1.442695
    %v570 = vpow.pop %v569
    %v571 = vadd.f32 %v570, 1.0
    %v572 = vrcp.pop %v571
    %v573 = vmul.f32 %v571, %v572
    %v574 = vsub.f32 1.0, %v573
    %v575 = vmul.f32 %v572, %v574
    %v576 = vadd.f32 %v572, %v575
    %vm577 = vweird.f32 %v571
    %vm578 = vweird.f32 %v572
    %vm579 = vmor %vm577, %vm578
    %v580 = vsel %vm579, %v572, %v576
    %v581 = vand.u32 2147483647, %v571
    %vm582 = vcmp.eq.f32.partialorder %v581, 8.507059e+37
    %v583 = vand.u32 %v571, 2147483648
    %v584 = vor.u32 1.1754944e-38, %v583
    %v585 = vsel %vm582, %v584, %v580
    %v586 = vmul.f32 1.0, %v585
    %v587 = vtanh.pop %v547
    %v588 = vxor.u32 %v548, 2147483648
    %v589 = vmul.f32 %v588, 1.442695
    %v590 = vpow.pop %v589
    %v591 = vadd.f32 %v590, 1.0
    %v592 = vrcp.pop %v591
    %v593 = vmul.f32 %v591, %v592
    %v594 = vsub.f32 1.0, %v593
    %v595 = vmul.f32 %v592, %v594
    %v596 = vadd.f32 %v592, %v595
    %vm597 = vweird.f32 %v591
    %vm598 = vweird.f32 %v592
    %vm599 = vmor %vm597, %vm598
    %v600 = vsel %vm599, %v592, %v596
    %v601 = vand.u32 2147483647, %v591
    %vm602 = vcmp.eq.f32.partialorder %v601, 8.507059e+37
    %v603 = vand.u32 %v591, 2147483648
    %v604 = vor.u32 1.1754944e-38, %v603
    %v605 = vsel %vm602, %v604, %v600
    %v606 = vmul.f32 1.0, %v605
    %v607 = vmul.f32 %v586, %v486
    %v608 = vmul.f32 %v567, %v587
    %v609 = vadd.f32 %v607, %v608
    %v610 = vtanh.pop %v609
    %v611 = vmul.f32 %v606, %v610
    %612 = vst [vmem:[#allocation3] sm:$0xff] %v609
    %613 = vst [vmem:[#allocation2] sm:$0xff] %v611
    %s614 = scalar_lea.vmem %s2, 16
    %615 = vst [vmem:[%s614] sm:$0xff] %v611
    %v616 = vld [vmem:[#allocation2] sm:$0xff]
    %v617 = vld [vmem:[#allocation3] sm:$0xff]
    %s618 = scalar_lea.vmem %s0, 96
    %v619 = vld [vmem:[%s618] sm:$0xff]
    %v620 = vld [vmem:[%s618 + $0x8] sm:$0xff]
    %v621 = vld [vmem:[%s618 + $0x10] sm:$0xff]
    %v622 = vld [vmem:[%s618 + $0x18] sm:$0xff]
    %v623 = vpack.c.bf16 %v616, %v616
    %624 = vmatpush.bf16.msra.mxu0 %v196
    %625 = vmatpush.bf16.msra.mxu0 %v192
    %626 = vmatpush.bf16.msra.mxu0 %v188
    %627 = vmatpush.bf16.msra.mxu0 %v184
    %628 = vmatpush.bf16.msra.mxu0 %v180
    %629 = vmatpush.bf16.msra.mxu0 %v176
    %630 = vmatpush.bf16.msra.mxu0 %v172
    %631 = vmatpush.bf16.msra.mxu0 %v168
    %632 = vmatmul.bf16.gmra.mxu0 %v623
    %v633 = vpop.f32.mrf.mxu0
    %v634 = vadd.f32 0.0, %v633
    %v635 = vpop.f32.mrf.mxu0
    %636 = vdwg.mxu0
    %637 = vmatpush.bf16.msra.mxu0 %v197
    %638 = vmatpush.bf16.msra.mxu0 %v193
    %639 = vmatpush.bf16.msra.mxu0 %v189
    %640 = vmatpush.bf16.msra.mxu0 %v185
    %641 = vmatpush.bf16.msra.mxu0 %v181
    %642 = vmatpush.bf16.msra.mxu0 %v177
    %643 = vmatpush.bf16.msra.mxu0 %v173
    %644 = vmatpush.bf16.msra.mxu0 %v169
    %645 = vmatmul.bf16.gmra.mxu0 %v623
    %v646 = vpop.f32.mrf.mxu0
    %v647 = vadd.f32 0.0, %v646
    %v648 = vpop.f32.mrf.mxu0
    %649 = vdwg.mxu0
    %650 = vmatpush.bf16.msra.mxu0 %v198
    %651 = vmatpush.bf16.msra.mxu0 %v194
    %652 = vmatpush.bf16.msra.mxu0 %v190
    %653 = vmatpush.bf16.msra.mxu0 %v186
    %654 = vmatpush.bf16.msra.mxu0 %v182
    %655 = vmatpush.bf16.msra.mxu0 %v178
    %656 = vmatpush.bf16.msra.mxu0 %v174
    %657 = vmatpush.bf16.msra.mxu0 %v170
    %658 = vmatmul.bf16.gmra.mxu0 %v623
    %v659 = vpop.f32.mrf.mxu0
    %v660 = vadd.f32 0.0, %v659
    %v661 = vpop.f32.mrf.mxu0
    %662 = vdwg.mxu0
    %663 = vmatpush.bf16.msra.mxu0 %v199
    %664 = vmatpush.bf16.msra.mxu0 %v195
    %665 = vmatpush.bf16.msra.mxu0 %v191
    %666 = vmatpush.bf16.msra.mxu0 %v187
    %667 = vmatpush.bf16.msra.mxu0 %v183
    %668 = vmatpush.bf16.msra.mxu0 %v179
    %669 = vmatpush.bf16.msra.mxu0 %v175
    %670 = vmatpush.bf16.msra.mxu0 %v171
    %671 = vmatmul.bf16.gmra.mxu0 %v623
    %v672 = vpop.f32.mrf.mxu0
    %v673 = vadd.f32 0.0, %v672
    %v674 = vpop.f32.mrf.mxu0
    %675 = vdwg.mxu0
    %v676 = vadd.f32 %v619, %v634
    %v677 = vadd.f32 %v620, %v647
    %v678 = vadd.f32 %v621, %v660
    %v679 = vadd.f32 %v622, %v673
    %v680 = vxor.u32 %v676, 2147483648
    %v681 = vmul.f32 %v680, 1.442695
    %v682 = vpow.pop %v681
    %v683 = vadd.f32 %v682, 1.0
    %v684 = vrcp.pop %v683
    %v685 = vmul.f32 %v683, %v684
    %v686 = vsub.f32 1.0, %v685
    %v687 = vmul.f32 %v684, %v686
    %v688 = vadd.f32 %v684, %v687
    %vm689 = vweird.f32 %v683
    %vm690 = vweird.f32 %v684
    %vm691 = vmor %vm689, %vm690
    %v692 = vsel %vm691, %v684, %v688
    %v693 = vand.u32 2147483647, %v683
    %vm694 = vcmp.eq.f32.partialorder %v693, 8.507059e+37
    %v695 = vand.u32 %v683, 2147483648
    %v696 = vor.u32 1.1754944e-38, %v695
    %v697 = vsel %vm694, %v696, %v692
    %v698 = vmul.f32 1.0, %v697
    %v699 = vxor.u32 %v677, 2147483648
    %v700 = vmul.f32 %v699, 1.442695
    %v701 = vpow.pop %v700
    %v702 = vadd.f32 %v701, 1.0
    %v703 = vrcp.pop %v702
    %v704 = vmul.f32 %v702, %v703
    %v705 = vsub.f32 1.0, %v704
    %v706 = vmul.f32 %v703, %v705
    %v707 = vadd.f32 %v703, %v706
    %vm708 = vweird.f32 %v702
    %vm709 = vweird.f32 %v703
    %vm710 = vmor %vm708, %vm709
    %v711 = vsel %vm710, %v703, %v707
    %v712 = vand.u32 2147483647, %v702
    %vm713 = vcmp.eq.f32.partialorder %v712, 8.507059e+37
    %v714 = vand.u32 %v702, 2147483648
    %v715 = vor.u32 1.1754944e-38, %v714
    %v716 = vsel %vm713, %v715, %v711
    %v717 = vmul.f32 1.0, %v716
    %v718 = vtanh.pop %v678
    %v719 = vxor.u32 %v679, 2147483648
    %v720 = vmul.f32 %v719, 1.442695
    %v721 = vpow.pop %v720
    %v722 = vadd.f32 %v721, 1.0
    %v723 = vrcp.pop %v722
    %v724 = vmul.f32 %v722, %v723
    %v725 = vsub.f32 1.0, %v724
    %v726 = vmul.f32 %v723, %v725
    %v727 = vadd.f32 %v723, %v726
    %vm728 = vweird.f32 %v722
    %vm729 = vweird.f32 %v723
    %vm730 = vmor %vm728, %vm729
    %v731 = vsel %vm730, %v723, %v727
    %v732 = vand.u32 2147483647, %v722
    %vm733 = vcmp.eq.f32.partialorder %v732, 8.507059e+37
    %v734 = vand.u32 %v722, 2147483648
    %v735 = vor.u32 1.1754944e-38, %v734
    %v736 = vsel %vm733, %v735, %v731
    %v737 = vmul.f32 1.0, %v736
    %v738 = vmul.f32 %v717, %v617
    %v739 = vmul.f32 %v698, %v718
    %v740 = vadd.f32 %v738, %v739
    %v741 = vtanh.pop %v740
    %v742 = vmul.f32 %v737, %v741
    %743 = vst [vmem:[#allocation3] sm:$0xff] %v740
    %744 = vst [vmem:[#allocation2] sm:$0xff] %v742
    %s745 = scalar_lea.vmem %s2, 24
    %746 = vst [vmem:[%s745] sm:$0xff] %v742
    %v747 = vld [vmem:[#allocation2] sm:$0xff]
    %v748 = vld [vmem:[#allocation3] sm:$0xff]
    %s749 = scalar_lea.vmem %s0, 128
    %v750 = vld [vmem:[%s749] sm:$0xff]
    %v751 = vld [vmem:[%s749 + $0x8] sm:$0xff]
    %v752 = vld [vmem:[%s749 + $0x10] sm:$0xff]
    %v753 = vld [vmem:[%s749 + $0x18] sm:$0xff]
    %v754 = vpack.c.bf16 %v747, %v747
    %755 = vmatpush.bf16.msra.mxu0 %v196
    %756 = vmatpush.bf16.msra.mxu0 %v192
    %757 = vmatpush.bf16.msra.mxu0 %v188
    %758 = vmatpush.bf16.msra.mxu0 %v184
    %759 = vmatpush.bf16.msra.mxu0 %v180
    %760 = vmatpush.bf16.msra.mxu0 %v176
    %761 = vmatpush.bf16.msra.mxu0 %v172
    %762 = vmatpush.bf16.msra.mxu0 %v168
    %763 = vmatmul.bf16.gmra.mxu0 %v754
    %v764 = vpop.f32.mrf.mxu0
    %v765 = vadd.f32 0.0, %v764
    %v766 = vpop.f32.mrf.mxu0
    %767 = vdwg.mxu0
    %768 = vmatpush.bf16.msra.mxu0 %v197
    %769 = vmatpush.bf16.msra.mxu0 %v193
    %770 = vmatpush.bf16.msra.mxu0 %v189
    %771 = vmatpush.bf16.msra.mxu0 %v185
    %772 = vmatpush.bf16.msra.mxu0 %v181
    %773 = vmatpush.bf16.msra.mxu0 %v177
    %774 = vmatpush.bf16.msra.mxu0 %v173
    %775 = vmatpush.bf16.msra.mxu0 %v169
    %776 = vmatmul.bf16.gmra.mxu0 %v754
    %v777 = vpop.f32.mrf.mxu0
    %v778 = vadd.f32 0.0, %v777
    %v779 = vpop.f32.mrf.mxu0
    %780 = vdwg.mxu0
    %781 = vmatpush.bf16.msra.mxu0 %v198
    %782 = vmatpush.bf16.msra.mxu0 %v194
    %783 = vmatpush.bf16.msra.mxu0 %v190
    %784 = vmatpush.bf16.msra.mxu0 %v186
    %785 = vmatpush.bf16.msra.mxu0 %v182
    %786 = vmatpush.bf16.msra.mxu0 %v178
    %787 = vmatpush.bf16.msra.mxu0 %v174
    %788 = vmatpush.bf16.msra.mxu0 %v170
    %789 = vmatmul.bf16.gmra.mxu0 %v754
    %v790 = vpop.f32.mrf.mxu0
    %v791 = vadd.f32 0.0, %v790
    %v792 = vpop.f32.mrf.mxu0
    %793 = vdwg.mxu0
    %794 = vmatpush.bf16.msra.mxu0 %v199
    %795 = vmatpush.bf16.msra.mxu0 %v195
    %796 = vmatpush.bf16.msra.mxu0 %v191
    %797 = vmatpush.bf16.msra.mxu0 %v187
    %798 = vmatpush.bf16.msra.mxu0 %v183
    %799 = vmatpush.bf16.msra.mxu0 %v179
    %800 = vmatpush.bf16.msra.mxu0 %v175
    %801 = vmatpush.bf16.msra.mxu0 %v171
    %802 = vmatmul.bf16.gmra.mxu0 %v754
    %v803 = vpop.f32.mrf.mxu0
    %v804 = vadd.f32 0.0, %v803
    %v805 = vpop.f32.mrf.mxu0
    %806 = vdwg.mxu0
    %v807 = vadd.f32 %v750, %v765
    %v808 = vadd.f32 %v751, %v778
    %v809 = vadd.f32 %v752, %v791
    %v810 = vadd.f32 %v753, %v804
    %v811 = vxor.u32 %v807, 2147483648
    %v812 = vmul.f32 %v811, 1.442695
    %v813 = vpow.pop %v812
    %v814 = vadd.f32 %v813, 1.0
    %v815 = vrcp.pop %v814
    %v816 = vmul.f32 %v814, %v815
    %v817 = vsub.f32 1.0, %v816
    %v818 = vmul.f32 %v815, %v817
    %v819 = vadd.f32 %v815, %v818
    %vm820 = vweird.f32 %v814
    %vm821 = vweird.f32 %v815
    %vm822 = vmor %vm820, %vm821
    %v823 = vsel %vm822, %v815, %v819
    %v824 = vand.u32 2147483647, %v814
    %vm825 = vcmp.eq.f32.partialorder %v824, 8.507059e+37
    %v826 = vand.u32 %v814, 2147483648
    %v827 = vor.u32 1.1754944e-38, %v826
    %v828 = vsel %vm825, %v827, %v823
    %v829 = vmul.f32 1.0, %v828
    %v830 = vxor.u32 %v808, 2147483648
    %v831 = vmul.f32 %v830, 1.442695
    %v832 = vpow.pop %v831
    %v833 = vadd.f32 %v832, 1.0
    %v834 = vrcp.pop %v833
    %v835 = vmul.f32 %v833, %v834
    %v836 = vsub.f32 1.0, %v835
    %v837 = vmul.f32 %v834, %v836
    %v838 = vadd.f32 %v834, %v837
    %vm839 = vweird.f32 %v833
    %vm840 = vweird.f32 %v834
    %vm841 = vmor %vm839, %vm840
    %v842 = vsel %vm841, %v834, %v838
    %v843 = vand.u32 2147483647, %v833
    %vm844 = vcmp.eq.f32.partialorder %v843, 8.507059e+37
    %v845 = vand.u32 %v833, 2147483648
    %v846 = vor.u32 1.1754944e-38, %v845
    %v847 = vsel %vm844, %v846, %v842
    %v848 = vmul.f32 1.0, %v847
    %v849 = vtanh.pop %v809
    %v850 = vxor.u32 %v810, 2147483648
    %v851 = vmul.f32 %v850, 1.442695
    %v852 = vpow.pop %v851
    %v853 = vadd.f32 %v852, 1.0
    %v854 = vrcp.pop %v853
    %v855 = vmul.f32 %v853, %v854
    %v856 = vsub.f32 1.0, %v855
    %v857 = vmul.f32 %v854, %v856
    %v858 = vadd.f32 %v854, %v857
    %vm859 = vweird.f32 %v853
    %vm860 = vweird.f32 %v854
    %vm861 = vmor %vm859, %vm860
    %v862 = vsel %vm861, %v854, %v858
    %v863 = vand.u32 2147483647, %v853
    %vm864 = vcmp.eq.f32.partialorder %v863, 8.507059e+37
    %v865 = vand.u32 %v853, 2147483648
    %v866 = vor.u32 1.1754944e-38, %v865
    %v867 = vsel %vm864, %v866, %v862
    %v868 = vmul.f32 1.0, %v867
    %v869 = vmul.f32 %v848, %v748
    %v870 = vmul.f32 %v829, %v849
    %v871 = vadd.f32 %v869, %v870
    %v872 = vtanh.pop %v871
    %v873 = vmul.f32 %v868, %v872
    %874 = vst [vmem:[#allocation3] sm:$0xff] %v871
    %875 = vst [vmem:[#allocation2] sm:$0xff] %v873
    %s876 = scalar_lea.vmem %s2, 32
    %877 = vst [vmem:[%s876] sm:$0xff] %v873
    %v878 = vld [vmem:[#allocation2] sm:$0xff]
    %v879 = vld [vmem:[#allocation3] sm:$0xff]
    %s880 = scalar_lea.vmem %s0, 160
    %v881 = vld [vmem:[%s880] sm:$0xff]
    %v882 = vld [vmem:[%s880 + $0x8] sm:$0xff]
    %v883 = vld [vmem:[%s880 + $0x10] sm:$0xff]
    %v884 = vld [vmem:[%s880 + $0x18] sm:$0xff]
    %v885 = vpack.c.bf16 %v878, %v878
    %886 = vmatpush.bf16.msra.mxu0 %v196
    %887 = vmatpush.bf16.msra.mxu0 %v192
    %888 = vmatpush.bf16.msra.mxu0 %v188
    %889 = vmatpush.bf16.msra.mxu0 %v184
    %890 = vmatpush.bf16.msra.mxu0 %v180
    %891 = vmatpush.bf16.msra.mxu0 %v176
    %892 = vmatpush.bf16.msra.mxu0 %v172
    %893 = vmatpush.bf16.msra.mxu0 %v168
    %894 = vmatmul.bf16.gmra.mxu0 %v885
    %v895 = vpop.f32.mrf.mxu0
    %v896 = vadd.f32 0.0, %v895
    %v897 = vpop.f32.mrf.mxu0
    %898 = vdwg.mxu0
    %899 = vmatpush.bf16.msra.mxu0 %v197
    %900 = vmatpush.bf16.msra.mxu0 %v193
    %901 = vmatpush.bf16.msra.mxu0 %v189
    %902 = vmatpush.bf16.msra.mxu0 %v185
    %903 = vmatpush.bf16.msra.mxu0 %v181
    %904 = vmatpush.bf16.msra.mxu0 %v177
    %905 = vmatpush.bf16.msra.mxu0 %v173
    %906 = vmatpush.bf16.msra.mxu0 %v169
    %907 = vmatmul.bf16.gmra.mxu0 %v885
    %v908 = vpop.f32.mrf.mxu0
    %v909 = vadd.f32 0.0, %v908
    %v910 = vpop.f32.mrf.mxu0
    %911 = vdwg.mxu0
    %912 = vmatpush.bf16.msra.mxu0 %v198
    %913 = vmatpush.bf16.msra.mxu0 %v194
    %914 = vmatpush.bf16.msra.mxu0 %v190
    %915 = vmatpush.bf16.msra.mxu0 %v186
    %916 = vmatpush.bf16.msra.mxu0 %v182
    %917 = vmatpush.bf16.msra.mxu0 %v178
    %918 = vmatpush.bf16.msra.mxu0 %v174
    %919 = vmatpush.bf16.msra.mxu0 %v170
    %920 = vmatmul.bf16.gmra.mxu0 %v885
    %v921 = vpop.f32.mrf.mxu0
    %v922 = vadd.f32 0.0, %v921
    %v923 = vpop.f32.mrf.mxu0
    %924 = vdwg.mxu0
    %925 = vmatpush.bf16.msra.mxu0 %v199
    %926 = vmatpush.bf16.msra.mxu0 %v195
    %927 = vmatpush.bf16.msra.mxu0 %v191
    %928 = vmatpush.bf16.msra.mxu0 %v187
    %929 = vmatpush.bf16.msra.mxu0 %v183
    %930 = vmatpush.bf16.msra.mxu0 %v179
    %931 = vmatpush.bf16.msra.mxu0 %v175
    %932 = vmatpush.bf16.msra.mxu0 %v171
    %933 = vmatmul.bf16.gmra.mxu0 %v885
    %v934 = vpop.f32.mrf.mxu0
    %v935 = vadd.f32 0.0, %v934
    %v936 = vpop.f32.mrf.mxu0
    %937 = vdwg.mxu0
    %v938 = vadd.f32 %v881, %v896
    %v939 = vadd.f32 %v882, %v909
    %v940 = vadd.f32 %v883, %v922
    %v941 = vadd.f32 %v884, %v935
    %v942 = vxor.u32 %v938, 2147483648
    %v943 = vmul.f32 %v942, 1.442695
    %v944 = vpow.pop %v943
    %v945 = vadd.f32 %v944, 1.0
    %v946 = vrcp.pop %v945
    %v947 = vmul.f32 %v945, %v946
    %v948 = vsub.f32 1.0, %v947
    %v949 = vmul.f32 %v946, %v948
    %v950 = vadd.f32 %v946, %v949
    %vm951 = vweird.f32 %v945
    %vm952 = vweird.f32 %v946
    %vm953 = vmor %vm951, %vm952
    %v954 = vsel %vm953, %v946, %v950
    %v955 = vand.u32 2147483647, %v945
    %vm956 = vcmp.eq.f32.partialorder %v955, 8.507059e+37
    %v957 = vand.u32 %v945, 2147483648
    %v958 = vor.u32 1.1754944e-38, %v957
    %v959 = vsel %vm956, %v958, %v954
    %v960 = vmul.f32 1.0, %v959
    %v961 = vxor.u32 %v939, 2147483648
    %v962 = vmul.f32 %v961, 1.442695
    %v963 = vpow.pop %v962
    %v964 = vadd.f32 %v963, 1.0
    %v965 = vrcp.pop %v964
    %v966 = vmul.f32 %v964, %v965
    %v967 = vsub.f32 1.0, %v966
    %v968 = vmul.f32 %v965, %v967
    %v969 = vadd.f32 %v965, %v968
    %vm970 = vweird.f32 %v964
    %vm971 = vweird.f32 %v965
    %vm972 = vmor %vm970, %vm971
    %v973 = vsel %vm972, %v965, %v969
    %v974 = vand.u32 2147483647, %v964
    %vm975 = vcmp.eq.f32.partialorder %v974, 8.507059e+37
    %v976 = vand.u32 %v964, 2147483648
    %v977 = vor.u32 1.1754944e-38, %v976
    %v978 = vsel %vm975, %v977, %v973
    %v979 = vmul.f32 1.0, %v978
    %v980 = vtanh.pop %v940
    %v981 = vxor.u32 %v941, 2147483648
    %v982 = vmul.f32 %v981, 1.442695
    %v983 = vpow.pop %v982
    %v984 = vadd.f32 %v983, 1.0
    %v985 = vrcp.pop %v984
    %v986 = vmul.f32 %v984, %v985
    %v987 = vsub.f32 1.0, %v986
    %v988 = vmul.f32 %v985, %v987
    %v989 = vadd.f32 %v985, %v988
    %vm990 = vweird.f32 %v984
    %vm991 = vweird.f32 %v985
    %vm992 = vmor %vm990, %vm991
    %v993 = vsel %vm992, %v985, %v989
    %v994 = vand.u32 2147483647, %v984
    %vm995 = vcmp.eq.f32.partialorder %v994, 8.507059e+37
    %v996 = vand.u32 %v984, 2147483648
    %v997 = vor.u32 1.1754944e-38, %v996
    %v998 = vsel %vm995, %v997, %v993
    %v999 = vmul.f32 1.0, %v998
    %v1000 = vmul.f32 %v979, %v879
    %v1001 = vmul.f32 %v960, %v980
    %v1002 = vadd.f32 %v1000, %v1001
    %v1003 = vtanh.pop %v1002
    %v1004 = vmul.f32 %v999, %v1003
    %1005 = vst [vmem:[#allocation3] sm:$0xff] %v1002
    %1006 = vst [vmem:[#allocation2] sm:$0xff] %v1004
    %s1007 = scalar_lea.vmem %s2, 40
    %1008 = vst [vmem:[%s1007] sm:$0xff] %v1004
    %v1009 = vld [vmem:[#allocation2] sm:$0xff]
    %v1010 = vld [vmem:[#allocation3] sm:$0xff]
    %s1011 = scalar_lea.vmem %s0, 192
    %v1012 = vld [vmem:[%s1011] sm:$0xff]
    %v1013 = vld [vmem:[%s1011 + $0x8] sm:$0xff]
    %v1014 = vld [vmem:[%s1011 + $0x10] sm:$0xff]
    %v1015 = vld [vmem:[%s1011 + $0x18] sm:$0xff]
    %v1016 = vpack.c.bf16 %v1009, %v1009
    %1017 = vmatpush.bf16.msra.mxu0 %v196
    %1018 = vmatpush.bf16.msra.mxu0 %v192
    %1019 = vmatpush.bf16.msra.mxu0 %v188
    %1020 = vmatpush.bf16.msra.mxu0 %v184
    %1021 = vmatpush.bf16.msra.mxu0 %v180
    %1022 = vmatpush.bf16.msra.mxu0 %v176
    %1023 = vmatpush.bf16.msra.mxu0 %v172
    %1024 = vmatpush.bf16.msra.mxu0 %v168
    %1025 = vmatmul.bf16.gmra.mxu0 %v1016
    %v1026 = vpop.f32.mrf.mxu0
    %v1027 = vadd.f32 0.0, %v1026
    %v1028 = vpop.f32.mrf.mxu0
    %1029 = vdwg.mxu0
    %1030 = vmatpush.bf16.msra.mxu0 %v197
    %1031 = vmatpush.bf16.msra.mxu0 %v193
    %1032 = vmatpush.bf16.msra.mxu0 %v189
    %1033 = vmatpush.bf16.msra.mxu0 %v185
    %1034 = vmatpush.bf16.msra.mxu0 %v181
    %1035 = vmatpush.bf16.msra.mxu0 %v177
    %1036 = vmatpush.bf16.msra.mxu0 %v173
    %1037 = vmatpush.bf16.msra.mxu0 %v169
    %1038 = vmatmul.bf16.gmra.mxu0 %v1016
    %v1039 = vpop.f32.mrf.mxu0
    %v1040 = vadd.f32 0.0, %v1039
    %v1041 = vpop.f32.mrf.mxu0
    %1042 = vdwg.mxu0
    %1043 = vmatpush.bf16.msra.mxu0 %v198
    %1044 = vmatpush.bf16.msra.mxu0 %v194
    %1045 = vmatpush.bf16.msra.mxu0 %v190
    %1046 = vmatpush.bf16.msra.mxu0 %v186
    %1047 = vmatpush.bf16.msra.mxu0 %v182
    %1048 = vmatpush.bf16.msra.mxu0 %v178
    %1049 = vmatpush.bf16.msra.mxu0 %v174
    %1050 = vmatpush.bf16.msra.mxu0 %v170
    %1051 = vmatmul.bf16.gmra.mxu0 %v1016
    %v1052 = vpop.f32.mrf.mxu0
    %v1053 = vadd.f32 0.0, %v1052
    %v1054 = vpop.f32.mrf.mxu0
    %1055 = vdwg.mxu0
    %1056 = vmatpush.bf16.msra.mxu0 %v199
    %1057 = vmatpush.bf16.msra.mxu0 %v195
    %1058 = vmatpush.bf16.msra.mxu0 %v191
    %1059 = vmatpush.bf16.msra.mxu0 %v187
    %1060 = vmatpush.bf16.msra.mxu0 %v183
    %1061 = vmatpush.bf16.msra.mxu0 %v179
    %1062 = vmatpush.bf16.msra.mxu0 %v175
    %1063 = vmatpush.bf16.msra.mxu0 %v171
    %1064 = vmatmul.bf16.gmra.mxu0 %v1016
    %v1065 = vpop.f32.mrf.mxu0
    %v1066 = vadd.f32 0.0, %v1065
    %v1067 = vpop.f32.mrf.mxu0
    %1068 = vdwg.mxu0
    %v1069 = vadd.f32 %v1012, %v1027
    %v1070 = vadd.f32 %v1013, %v1040
    %v1071 = vadd.f32 %v1014, %v1053
    %v1072 = vadd.f32 %v1015, %v1066
    %v1073 = vxor.u32 %v1069, 2147483648
    %v1074 = vmul.f32 %v1073, 1.442695
    %v1075 = vpow.pop %v1074
    %v1076 = vadd.f32 %v1075, 1.0
    %v1077 = vrcp.pop %v1076
    %v1078 = vmul.f32 %v1076, %v1077
    %v1079 = vsub.f32 1.0, %v1078
    %v1080 = vmul.f32 %v1077, %v1079
    %v1081 = vadd.f32 %v1077, %v1080
    %vm1082 = vweird.f32 %v1076
    %vm1083 = vweird.f32 %v1077
    %vm1084 = vmor %vm1082, %vm1083
    %v1085 = vsel %vm1084, %v1077, %v1081
    %v1086 = vand.u32 2147483647, %v1076
    %vm1087 = vcmp.eq.f32.partialorder %v1086, 8.507059e+37
    %v1088 = vand.u32 %v1076, 2147483648
    %v1089 = vor.u32 1.1754944e-38, %v1088
    %v1090 = vsel %vm1087, %v1089, %v1085
    %v1091 = vmul.f32 1.0, %v1090
    %v1092 = vxor.u32 %v1070, 2147483648
    %v1093 = vmul.f32 %v1092, 1.442695
    %v1094 = vpow.pop %v1093
    %v1095 = vadd.f32 %v1094, 1.0
    %v1096 = vrcp.pop %v1095
    %v1097 = vmul.f32 %v1095, %v1096
    %v1098 = vsub.f32 1.0, %v1097
    %v1099 = vmul.f32 %v1096, %v1098
    %v1100 = vadd.f32 %v1096, %v1099
    %vm1101 = vweird.f32 %v1095
    %vm1102 = vweird.f32 %v1096
    %vm1103 = vmor %vm1101, %vm1102
    %v1104 = vsel %vm1103, %v1096, %v1100
    %v1105 = vand.u32 2147483647, %v1095
    %vm1106 = vcmp.eq.f32.partialorder %v1105, 8.507059e+37
    %v1107 = vand.u32 %v1095, 2147483648
    %v1108 = vor.u32 1.1754944e-38, %v1107
    %v1109 = vsel %vm1106, %v1108, %v1104
    %v1110 = vmul.f32 1.0, %v1109
    %v1111 = vtanh.pop %v1071
    %v1112 = vxor.u32 %v1072, 2147483648
    %v1113 = vmul.f32 %v1112, 1.442695
    %v1114 = vpow.pop %v1113
    %v1115 = vadd.f32 %v1114, 1.0
    %v1116 = vrcp.pop %v1115
    %v1117 = vmul.f32 %v1115, %v1116
    %v1118 = vsub.f32 1.0, %v1117
    %v1119 = vmul.f32 %v1116, %v1118
    %v1120 = vadd.f32 %v1116, %v1119
    %vm1121 = vweird.f32 %v1115
    %vm1122 = vweird.f32 %v1116
    %vm1123 = vmor %vm1121, %vm1122
    %v1124 = vsel %vm1123, %v1116, %v1120
    %v1125 = vand.u32 2147483647, %v1115
    %vm1126 = vcmp.eq.f32.partialorder %v1125, 8.507059e+37
    %v1127 = vand.u32 %v1115, 2147483648
    %v1128 = vor.u32 1.1754944e-38, %v1127
    %v1129 = vsel %vm1126, %v1128, %v1124
    %v1130 = vmul.f32 1.0, %v1129
    %v1131 = vmul.f32 %v1110, %v1010
    %v1132 = vmul.f32 %v1091, %v1111
    %v1133 = vadd.f32 %v1131, %v1132
    %v1134 = vtanh.pop %v1133
    %v1135 = vmul.f32 %v1130, %v1134
    %1136 = vst [vmem:[#allocation3] sm:$0xff] %v1133
    %1137 = vst [vmem:[#allocation2] sm:$0xff] %v1135
    %s1138 = scalar_lea.vmem %s2, 48
    %1139 = vst [vmem:[%s1138] sm:$0xff] %v1135
    %v1140 = vld [vmem:[#allocation2] sm:$0xff]
    %v1141 = vld [vmem:[#allocation3] sm:$0xff]
    %s1142 = scalar_lea.vmem %s0, 224
    %v1143 = vld [vmem:[%s1142] sm:$0xff]
    %v1144 = vld [vmem:[%s1142 + $0x8] sm:$0xff]
    %v1145 = vld [vmem:[%s1142 + $0x10] sm:$0xff]
    %v1146 = vld [vmem:[%s1142 + $0x18] sm:$0xff]
    %v1147 = vpack.c.bf16 %v1140, %v1140
    %1148 = vmatpush.bf16.msra.mxu0 %v196
    %1149 = vmatpush.bf16.msra.mxu0 %v192
    %1150 = vmatpush.bf16.msra.mxu0 %v188
    %1151 = vmatpush.bf16.msra.mxu0 %v184
    %1152 = vmatpush.bf16.msra.mxu0 %v180
    %1153 = vmatpush.bf16.msra.mxu0 %v176
    %1154 = vmatpush.bf16.msra.mxu0 %v172
    %1155 = vmatpush.bf16.msra.mxu0 %v168
    %1156 = vmatmul.bf16.gmra.mxu0 %v1147
    %v1157 = vpop.f32.mrf.mxu0
    %v1158 = vadd.f32 0.0, %v1157
    %v1159 = vpop.f32.mrf.mxu0
    %1160 = vdwg.mxu0
    %1161 = vmatpush.bf16.msra.mxu0 %v197
    %1162 = vmatpush.bf16.msra.mxu0 %v193
    %1163 = vmatpush.bf16.msra.mxu0 %v189
    %1164 = vmatpush.bf16.msra.mxu0 %v185
    %1165 = vmatpush.bf16.msra.mxu0 %v181
    %1166 = vmatpush.bf16.msra.mxu0 %v177
    %1167 = vmatpush.bf16.msra.mxu0 %v173
    %1168 = vmatpush.bf16.msra.mxu0 %v169
    %1169 = vmatmul.bf16.gmra.mxu0 %v1147
    %v1170 = vpop.f32.mrf.mxu0
    %v1171 = vadd.f32 0.0, %v1170
    %v1172 = vpop.f32.mrf.mxu0
    %1173 = vdwg.mxu0
    %1174 = vmatpush.bf16.msra.mxu0 %v198
    %1175 = vmatpush.bf16.msra.mxu0 %v194
    %1176 = vmatpush.bf16.msra.mxu0 %v190
    %1177 = vmatpush.bf16.msra.mxu0 %v186
    %1178 = vmatpush.bf16.msra.mxu0 %v182
    %1179 = vmatpush.bf16.msra.mxu0 %v178
    %1180 = vmatpush.bf16.msra.mxu0 %v174
    %1181 = vmatpush.bf16.msra.mxu0 %v170
    %1182 = vmatmul.bf16.gmra.mxu0 %v1147
    %v1183 = vpop.f32.mrf.mxu0
    %v1184 = vadd.f32 0.0, %v1183
    %v1185 = vpop.f32.mrf.mxu0
    %1186 = vdwg.mxu0
    %1187 = vmatpush.bf16.msra.mxu0 %v199
    %1188 = vmatpush.bf16.msra.mxu0 %v195
    %1189 = vmatpush.bf16.msra.mxu0 %v191
    %1190 = vmatpush.bf16.msra.mxu0 %v187
    %1191 = vmatpush.bf16.msra.mxu0 %v183
    %1192 = vmatpush.bf16.msra.mxu0 %v179
    %1193 = vmatpush.bf16.msra.mxu0 %v175
    %1194 = vmatpush.bf16.msra.mxu0 %v171
    %1195 = vmatmul.bf16.gmra.mxu0 %v1147
    %v1196 = vpop.f32.mrf.mxu0
    %v1197 = vadd.f32 0.0, %v1196
    %v1198 = vpop.f32.mrf.mxu0
    %1199 = vdwg.mxu0
    %v1200 = vadd.f32 %v1143, %v1158
    %v1201 = vadd.f32 %v1144, %v1171
    %v1202 = vadd.f32 %v1145, %v1184
    %v1203 = vadd.f32 %v1146, %v1197
    %v1204 = vxor.u32 %v1200, 2147483648
    %v1205 = vmul.f32 %v1204, 1.442695
    %v1206 = vpow.pop %v1205
    %v1207 = vadd.f32 %v1206, 1.0
    %v1208 = vrcp.pop %v1207
    %v1209 = vmul.f32 %v1207, %v1208
    %v1210 = vsub.f32 1.0, %v1209
    %v1211 = vmul.f32 %v1208, %v1210
    %v1212 = vadd.f32 %v1208, %v1211
    %vm1213 = vweird.f32 %v1207
    %vm1214 = vweird.f32 %v1208
    %vm1215 = vmor %vm1213, %vm1214
    %v1216 = vsel %vm1215, %v1208, %v1212
    %v1217 = vand.u32 2147483647, %v1207
    %vm1218 = vcmp.eq.f32.partialorder %v1217, 8.507059e+37
    %v1219 = vand.u32 %v1207, 2147483648
    %v1220 = vor.u32 1.1754944e-38, %v1219
    %v1221 = vsel %vm1218, %v1220, %v1216
    %v1222 = vmul.f32 1.0, %v1221
    %v1223 = vxor.u32 %v1201, 2147483648
    %v1224 = vmul.f32 %v1223, 1.442695
    %v1225 = vpow.pop %v1224
    %v1226 = vadd.f32 %v1225, 1.0
    %v1227 = vrcp.pop %v1226
    %v1228 = vmul.f32 %v1226, %v1227
    %v1229 = vsub.f32 1.0, %v1228
    %v1230 = vmul.f32 %v1227, %v1229
    %v1231 = vadd.f32 %v1227, %v1230
    %vm1232 = vweird.f32 %v1226
    %vm1233 = vweird.f32 %v1227
    %vm1234 = vmor %vm1232, %vm1233
    %v1235 = vsel %vm1234, %v1227, %v1231
    %v1236 = vand.u32 2147483647, %v1226
    %vm1237 = vcmp.eq.f32.partialorder %v1236, 8.507059e+37
    %v1238 = vand.u32 %v1226, 2147483648
    %v1239 = vor.u32 1.1754944e-38, %v1238
    %v1240 = vsel %vm1237, %v1239, %v1235
    %v1241 = vmul.f32 1.0, %v1240
    %v1242 = vtanh.pop %v1202
    %v1243 = vxor.u32 %v1203, 2147483648
    %v1244 = vmul.f32 %v1243, 1.442695
    %v1245 = vpow.pop %v1244
    %v1246 = vadd.f32 %v1245, 1.0
    %v1247 = vrcp.pop %v1246
    %v1248 = vmul.f32 %v1246, %v1247
    %v1249 = vsub.f32 1.0, %v1248
    %v1250 = vmul.f32 %v1247, %v1249
    %v1251 = vadd.f32 %v1247, %v1250
    %vm1252 = vweird.f32 %v1246
    %vm1253 = vweird.f32 %v1247
    %vm1254 = vmor %vm1252, %vm1253
    %v1255 = vsel %vm1254, %v1247, %v1251
    %v1256 = vand.u32 2147483647, %v1246
    %vm1257 = vcmp.eq.f32.partialorder %v1256, 8.507059e+37
    %v1258 = vand.u32 %v1246, 2147483648
    %v1259 = vor.u32 1.1754944e-38, %v1258
    %v1260 = vsel %vm1257, %v1259, %v1255
    %v1261 = vmul.f32 1.0, %v1260
    %v1262 = vmul.f32 %v1241, %v1141
    %v1263 = vmul.f32 %v1222, %v1242
    %v1264 = vadd.f32 %v1262, %v1263
    %v1265 = vtanh.pop %v1264
    %v1266 = vmul.f32 %v1261, %v1265
    %1267 = vst [vmem:[#allocation3] sm:$0xff] %v1264
    %1268 = vst [vmem:[#allocation2] sm:$0xff] %v1266
    %s1269 = scalar_lea.vmem %s2, 56
    %1270 = vst [vmem:[%s1269] sm:$0xff] %v1266
    // Predicated region
    $region18: #{lstm_model_forward.6} parent=1 // pred_check
      _
    $region19: #{lstm_model_forward.6} parent=1 // pred_check_branch
      %1272 = sbr.rel (0) target = $region21
    $region20: #{lstm_model_forward.6} parent=1 // pred_region
      _
    $region21: #{lstm_model_forward.6} parent=1 // pred_fallthru
      _
    // Predicated region
    $region22: #{lstm_model_forward.6} parent=1 // pred_check
      _
    $region23: #{lstm_model_forward.6} parent=1 // pred_check_branch
      %1274 = sbr.rel (0) target = $region25
    $region24: #{lstm_model_forward.6} parent=1 // pred_region
      _
    $region25: #{lstm_model_forward.6} parent=1 // pred_fallthru
      _
    %1275 = vsyncpa [#allocation5], 1

</llo_original>
